<compile_context>
chip_gen: v7x
topology: tpu7x:2x2x1
jax: 0.10.0
libtpu: 0.0.40
codegen_flags: <defaults>
</compile_context>

<pallas_src>
import functools

import jax
import jax.numpy as jnp
from jax.experimental import pallas as pl
from jax.experimental.pallas import tpu as pltpu


def _round_up(x, m):
    return ((x + m - 1) // m) * m


# ----------------------------------------------------------------------------
# Kernel
# ----------------------------------------------------------------------------
def gcn_kernel(adj_ref, x_ref,
               w1_ref, b1_ref,
               wg_ref, bg_ref,
               wh_ref, bh_ref,
               out_ref, *, tb, n, dp, use_blockdiag, fold_gates):
    rows = tb * n
    # x: (rows, Din) f32 in HBM -> bf16 in-kernel (cast hides under MXU work).
    x = x_ref[...].astype(jnp.bfloat16)

    # h = linear1(x): bf16 MXU matmul, f32 accumulation, f32 bias add.
    h = jnp.dot(x, w1_ref[...], preferred_element_type=jnp.float32) + b1_ref[...]
    h_bf = h.astype(jnp.bfloat16)

    # h1 = bmm(adj, h) for every batch element in this tile.
    if use_blockdiag:
        # Block-diagonal (rows, rows) bf16 adjacency -> one lane-dense matmul.
        h1 = jnp.dot(adj_ref[...], h_bf, preferred_element_type=jnp.float32)
    else:
        adj = adj_ref[...].astype(jnp.bfloat16)            # (tb, n, n)
        h1 = jnp.einsum("bij,bjd->bid", adj, h_bf.reshape(tb, n, dp),
                        preferred_element_type=jnp.float32).reshape(rows, dp)
    h1_bf = h1.astype(jnp.bfloat16)

    # Fused gate matmuls; gate columns laid out as [ r | z | n ], each dp wide.
    if fold_gates:
        # gi = x @ (W1 @ Wi) + (b1 @ Wi + bi)  -- composed in prepare_params.
        gi = jnp.dot(x, wg_ref[...], preferred_element_type=jnp.float32) + bg_ref[...]
    else:
        gi = jnp.dot(h_bf, wg_ref[...], preferred_element_type=jnp.float32) + bg_ref[...]
    gh = jnp.dot(h1_bf, wh_ref[...], preferred_element_type=jnp.float32) + bh_ref[...]

    r_t = jax.nn.sigmoid(gi[:, 0:dp] + gh[:, 0:dp])
    z_t = jax.nn.sigmoid(gi[:, dp:2 * dp] + gh[:, dp:2 * dp])
    n_t = jnp.tanh(gi[:, 2 * dp:3 * dp] + r_t * gh[:, 2 * dp:3 * dp])

    # GRUCellMod: h_t = z*n + (1 - z) * inp  (inp == h, the linear1 output).
    out_ref[...] = z_t * n_t + (1.0 - z_t) * h


# ----------------------------------------------------------------------------
# Parameter preparation (padding / fusing / folding)
# ----------------------------------------------------------------------------
def prepare_params(params, compute_dtype=jnp.bfloat16, fold_gates=None):
    """Pad Dout->Dp (multiple of 128), fuse the six gate weights into two wide
    matrices [r|z|n], optionally fold W1 into the input-gate weights, and cast
    MXU operands to bf16 (biases stay f32; added post-accumulation)."""
    din, dout = params["w1"].shape
    dp = _round_up(dout, 128)
    if fold_gates is None:
        fold_gates = din < dp            # fold only when it reduces FLOPs

    def padw(w, rows, cols):
        return jnp.pad(w, ((0, rows - w.shape[0]), (0, cols - w.shape[1])))

    w1f = padw(params["w1"], din, dp)                       # (din, dp) f32
    b1f = padw(params["b1"], 1, dp)                         # (1, dp)   f32

    wif = jnp.concatenate([padw(params["w_ir"], dp, dp),
                           padw(params["w_iz"], dp, dp),
                           padw(params["w_in"], dp, dp)], axis=1)   # (dp, 3dp)
    bif = jnp.concatenate([padw(params["b_ir"], 1, dp),
                           padw(params["b_iz"], 1, dp),
                           padw(params["b_in"], 1, dp)], axis=1)    # (1, 3dp)
    whf = jnp.concatenate([padw(params["w_hr"], dp, dp),
                           padw(params["w_hz"], dp, dp),
                           padw(params["w_hn"], dp, dp)], axis=1)
    bhf = jnp.concatenate([padw(params["b_hr"], 1, dp),
                           padw(params["b_hz"], 1, dp),
                           padw(params["b_hn"], 1, dp)], axis=1)

    if fold_gates:
        # Compose in f32, cast once (avoids compounding bf16 rounding).
        wg = (w1f @ wif).astype(compute_dtype)              # (din, 3dp)
        bg = b1f @ wif + bif                                # (1, 3dp) f32
    else:
        wg = wif.astype(compute_dtype)                      # (dp, 3dp)
        bg = bif

    return {"w1": w1f.astype(compute_dtype), "b1": b1f,
            "wg": wg, "bg": bg,
            "wh": whf.astype(compute_dtype), "bh": bhf,
            "dp": dp, "dout": dout, "din": din, "fold": fold_gates}


# ----------------------------------------------------------------------------
# Tiling policy
# ----------------------------------------------------------------------------
def _chip_info():
    """(num_tensorcores_per_device, vmem_bytes_per_core).  Conservative on
    unknown chips."""
    try:
        kind = jax.devices()[0].device_kind.lower()
    except Exception:
        kind = ""
    if "7" in kind:                       # v7x: 2 TCs, 64 MiB VMEM per TC
        return 2, 64 * 1024 * 1024
    if "v5" in kind or "v6" in kind:      # v5e / v6e: 1 TC, 128 MiB VMEM
        return 1, 128 * 1024 * 1024
    return 1, 64 * 1024 * 1024            # unknown: be conservative


def _vmem_estimate(tb, n, din, dp, const_buffered=True):
    """Rough per-grid-step VMEM footprint in bytes (upper bound)."""
    rows = tb * n
    bf, f32 = 2, 4
    wrep = 1 if const_buffered else 2
    weights = wrep * (din * dp * bf + dp * f32
                      + 2 * (dp * 3 * dp * bf)
                      + 2 * (3 * dp * f32))
    adj_in = 2 * max(rows * rows, tb * n * n) * f32         # double-buffered
    x_in = 2 * rows * din * f32
    out = 2 * rows * dp * f32
    live = rows * dp * (f32 + bf) * 2 + rows * 3 * dp * f32 * 2   # h/h1, gi/gh
    return weights + adj_in + x_in + out + int(1.5 * live)


def _choose_tb(batch, n, din, dp, vmem_budget, min_steps, target_rows=1024):
    """Largest divisor of `batch` whose tile stays within the row budget and
    VMEM budget, keeping >= min_steps grid steps (min_steps=2 on v7x so both
    TensorCores get work, 1 on single-TC chips)."""
    best = None
    for cand in range(1, batch + 1):
        if batch % cand:
            continue
        steps = batch // cand
        if steps < min_steps:
            continue
        rows = cand * n
        if rows > max(target_rows, n):
            continue
        if steps > 1 and rows % 8 != 0:   # sublane-aligned row blocks when tiled
            continue
        if _vmem_estimate(cand, n, din, dp) > vmem_budget:
            continue
        best = cand
    if best is None:
        best = 1    # degrades (correct but slow) for awkward/prime batches
    return best


# ----------------------------------------------------------------------------
# Forward wrapper
# ----------------------------------------------------------------------------
def gcn_forward(adj, x, params, tb=None, target_rows=1024):
    batch, n, din = x.shape
    prep = prepare_params(params)
    dp, dout, fold = prep["dp"], prep["dout"], prep["fold"]

    num_tc, vmem_cap = _chip_info()
    vmem_budget = int(0.6 * vmem_cap)
    vmem_limit = int(0.8 * vmem_cap)
    min_steps = 2 if (num_tc >= 2 and batch >= 2) else 1

    if tb is None:
        tb = _choose_tb(batch, n, din, dp, vmem_budget, min_steps, target_rows)
    assert batch % tb == 0, "batch must be divisible by the batch tile"
    steps = batch // tb
    rows = tb * n
    grid = (steps,)

    # Small-N: block-diagonal adjacency -> one lane-dense MXU matmul per step.
    use_blockdiag = (n < 128) and (rows <= 1024)

    # Inputs stay f32 (cast to bf16 inside the kernel); x flattened to a
    # lane-dense 2-D slab.
    x2d = x.reshape(batch * n, din)

    if use_blockdiag:
        adjb = adj.reshape(steps, tb, n, n).astype(jnp.bfloat16)
        eye = jnp.eye(tb, dtype=jnp.bfloat16)
        adj_arg = (adjb[:, :, :, None, :] * eye[None, :, None, :, None]
                   ).reshape(steps * rows, rows)            # stacked block-diags
        adj_shape, adj_map = (rows, rows), (lambda i: (i, 0))
    else:
        adj_arg = adj                                        # f32 (B, n, n)
        adj_shape, adj_map = (tb, n, n), (lambda i: (i, 0, 0))

    kernel = functools.partial(gcn_kernel, tb=tb, n=n, dp=dp,
                               use_blockdiag=use_blockdiag, fold_gates=fold)

    row_map = lambda i: (i, 0)
    const2 = lambda i: (0, 0)
    wg_rows = din if fold else dp

    def build_call(buffer_consts):
        def cspec(shape):
            # Constant-index operands: single-buffer (index_map is (0,0) for
            # every grid step, so double-buffering only wastes VMEM).
            if buffer_consts:
                return pl.BlockSpec(shape, const2, pipeline_mode=pl.Buffered(1))
            return pl.BlockSpec(shape, const2)

        in_specs = [
            pl.BlockSpec(adj_shape, adj_map),        # adj (per-tile)
            pl.BlockSpec((rows, din), row_map),      # x   (per-tile rows, f32)
            cspec((din, dp)),                        # w1
            cspec((1, dp)),                          # b1
            cspec((wg_rows, 3 * dp)),                # fused/folded input-gate W
            cspec((1, 3 * dp)),                      # fused/folded input-gate b
            cspec((dp, 3 * dp)),                     # fused W_h = [W_hr|W_hz|W_hn]
            cspec((1, 3 * dp)),                      # fused b_h
        ]
        return pl.pallas_call(
            kernel,
            out_shape=jax.ShapeDtypeStruct((batch * n, dp), jnp.float32),
            grid=grid,
            in_specs=in_specs,
            out_specs=pl.BlockSpec((rows, dp), row_map),
            compiler_params=pltpu.CompilerParams(
                dimension_semantics=("parallel",),
                vmem_limit_bytes=vmem_limit),
        )

    args = (adj_arg, x2d, prep["w1"], prep["b1"], prep["wg"], prep["bg"],
            prep["wh"], prep["bh"])
    try:
        out2d = jax.block_until_ready(build_call(True)(*args))
    except Exception:
        # Fallback if this JAX build rejects single-buffered pipeline_mode.
        out2d = jax.block_until_ready(build_call(False)(*args))

    # Drop the lane padding and restore (B, N, Dout).
    return out2d.reshape(batch, n, dp)[:, :, :dout]


# ----------------------------------------------------------------------------
# Init + references
# ----------------------------------------------------------------------------
def init_params(key, input_dim, output_dim):
    """Deterministic synthetic init mirroring the PyTorch module's parameter
    shapes. Linear weights stored pre-transposed as (in, out)."""
    keys = jax.random.split(key, 16)
    scale = 0.1

    def w(k, fan_in, fan_out):
        return scale * jax.random.normal(k, (fan_in, fan_out), jnp.float32)

    def b(k, fan_out):
        return scale * jax.random.normal(k, (1, fan_out), jnp.float32)

    return {
        "w1": w(keys[0], input_dim, output_dim), "b1": b(keys[1], output_dim),
        "w_ir": w(keys[2], output_dim, output_dim), "b_ir": b(keys[3], output_dim),
        "w_hr": w(keys[4], output_dim, output_dim), "b_hr": b(keys[5], output_dim),
        "w_in": w(keys[6], output_dim, output_dim), "b_in": b(keys[7], output_dim),
        "w_hn": w(keys[8], output_dim, output_dim), "b_hn": b(keys[9], output_dim),
        "w_iz": w(keys[10], output_dim, output_dim), "b_iz": b(keys[11], output_dim),
        "w_hz": w(keys[12], output_dim, output_dim), "b_hz": b(keys[13], output_dim),
        # eps is declared in the PyTorch module but unused in forward(); parity only.
        "eps": jax.random.normal(keys[14], (1,), jnp.float32),
    }


def gcn_reference_f32(adj, x, params):
    """Pure-f32 JAX reference of the PyTorch forward (semantic check)."""
    def lin(inp, w, b):
        return inp @ w + b
    h = lin(x, params["w1"], params["b1"])
    h1 = jnp.einsum("bij,bjd->bid", adj, h)
    r = jax.nn.sigmoid(lin(h, params["w_ir"], params["b_ir"]) +
                       lin(h1, params["w_hr"], params["b_hr"]))
    z = jax.nn.sigmoid(lin(h, params["w_iz"], params["b_iz"]) +
                       lin(h1, params["w_hz"], params["b_hz"]))
    nn = jnp.tanh(lin(h, params["w_in"], params["b_in"]) +
                  r * lin(h1, params["w_hn"], params["b_hn"]))
    return z * nn + (1.0 - z) * h


def gcn_reference_mirror(adj, x, prep):
    """Plain-JAX reference mirroring the kernel's exact numerics (bf16 MXU
    operands, f32 accumulation, fused [r|z|n] gates, optional W1-fold)."""
    bf = jnp.bfloat16
    batch, n, din = x.shape
    dp = prep["dp"]
    x2 = x.reshape(batch * n, din).astype(bf)
    h = jnp.dot(x2, prep["w1"], preferred_element_type=jnp.float32) + prep["b1"]
    h_bf = h.astype(bf)
    h1 = jnp.einsum("bij,bjd->bid", adj.astype(bf), h_bf.reshape(batch, n, dp),
                    preferred_element_type=jnp.float32).reshape(batch * n, dp)
    h1_bf = h1.astype(bf)
    lhs = x2 if prep["fold"] else h_bf
    gi = jnp.dot(lhs, prep["wg"], preferred_element_type=jnp.float32) + prep["bg"]
    gh = jnp.dot(h1_bf, prep["wh"], preferred_element_type=jnp.float32) + prep["bh"]
    r = jax.nn.sigmoid(gi[:, :dp] + gh[:, :dp])
    z = jax.nn.sigmoid(gi[:, dp:2 * dp] + gh[:, dp:2 * dp])
    nn = jnp.tanh(gi[:, 2 * dp:] + r * gh[:, 2 * dp:])
    out = z * nn + (1.0 - z) * h
    return out.reshape(batch, n, dp)[:, :, :prep["dout"]]


if __name__ == "__main__":
    B, N, Din, Dout = 2, 8, 16, 32

    key = jax.random.PRNGKey(0)
    k_adj, k_x, k_p = jax.random.split(key, 3)

    adj = jax.random.uniform(k_adj, (B, N, N), jnp.float32)
    x = jax.random.normal(k_x, (B, N, Din), jnp.float32)
    params = init_params(k_p, Din, Dout)

    out = gcn_forward(adj, x, params)
    out = jax.block_until_ready(out)
    assert out.shape == (B, N, Dout)
    assert bool(jnp.all(jnp.isfinite(out)))

    # Tight check against a reference with identical (bf16-operand) numerics.
    prep = prepare_params(params)
    ref_mirror = gcn_reference_mirror(adj, x, prep)
    assert jnp.allclose(out, ref_mirror, atol=2e-3, rtol=2e-3), \
        "mismatch vs bf16-mirrored reference"

    # Looser check against the full-f32 PyTorch-equivalent forward.
    ref_f32 = gcn_reference_f32(adj, x, params)
    assert jnp.allclose(out, ref_f32, atol=5e-2, rtol=5e-2), \
        "mismatch vs f32 reference"

    print("KERNEL_OK")
</pallas_src>

<mosaic_0001>
module attributes {stable_mosaic.version = 11 : i64} {
  func.func @gcn_kernel(%arg0: i32, %arg1: memref<16x16xbf16, #tpu.memory_space<vmem>>, %arg2: memref<16x16xf32, #tpu.memory_space<vmem>>, %arg3: memref<16x128xbf16, #tpu.memory_space<vmem>>, %arg4: memref<1x128xf32, #tpu.memory_space<vmem>>, %arg5: memref<16x384xbf16, #tpu.memory_space<vmem>>, %arg6: memref<1x384xf32, #tpu.memory_space<vmem>>, %arg7: memref<128x384xbf16, #tpu.memory_space<vmem>>, %arg8: memref<1x384xf32, #tpu.memory_space<vmem>>, %arg9: memref<16x128xf32, #tpu.memory_space<vmem>>) attributes {dimension_semantics = [#tpu.dimension_semantics<parallel>], iteration_bounds = array<i64: 1>, scalar_prefetch = 0 : i64, scratch_operands = 0 : i64, tpu.core_type = #tpu.core_type<tc>, window_params = [{transform_indices = @transform_0, window_bounds = array<i64: 16, 16>}, {transform_indices = @transform_1, window_bounds = array<i64: 16, 16>}, {pipeline_mode = #tpu.pipeline_mode<synchronous>, transform_indices = @transform_2, window_bounds = array<i64: 16, 128>}, {pipeline_mode = #tpu.pipeline_mode<synchronous>, transform_indices = @transform_3, window_bounds = array<i64: 1, 128>}, {pipeline_mode = #tpu.pipeline_mode<synchronous>, transform_indices = @transform_4, window_bounds = array<i64: 16, 384>}, {pipeline_mode = #tpu.pipeline_mode<synchronous>, transform_indices = @transform_5, window_bounds = array<i64: 1, 384>}, {pipeline_mode = #tpu.pipeline_mode<synchronous>, transform_indices = @transform_6, window_bounds = array<i64: 128, 384>}, {pipeline_mode = #tpu.pipeline_mode<synchronous>, transform_indices = @transform_7, window_bounds = array<i64: 1, 384>}, {transform_indices = @transform_8, window_bounds = array<i64: 16, 128>}]} {
    %c0 = arith.constant 0 : index
    %c0_0 = arith.constant 0 : index
    %0 = vector.load %arg2[%c0, %c0_0] : memref<16x16xf32, #tpu.memory_space<vmem>>, vector<16x16xf32>
    %1 = arith.truncf %0 : vector<16x16xf32> to vector<16x16xbf16>
    %c0_1 = arith.constant 0 : index
    %c0_2 = arith.constant 0 : index
    %2 = vector.load %arg3[%c0_1, %c0_2] : memref<16x128xbf16, #tpu.memory_space<vmem>>, vector<16x128xbf16>
    %cst = arith.constant dense<0.000000e+00> : vector<16x128xf32>
    %3 = tpu.matmul %1, %2, %cst {dimension_numbers = #tpu.dot_dimension_numbers<[1], [0], [0], [1], [0, 0, 1, 1], [], []>} : vector<16x16xbf16>, vector<16x128xbf16>, vector<16x128xf32> -> vector<16x128xf32>
    %c0_3 = arith.constant 0 : index
    %c0_4 = arith.constant 0 : index
    %4 = vector.load %arg4[%c0_3, %c0_4] : memref<1x128xf32, #tpu.memory_space<vmem>>, vector<1x128xf32>
    %5 = vector.broadcast %4 : vector<1x128xf32> to vector<16x128xf32>
    %6 = arith.addf %3, %5 : vector<16x128xf32>
    %7 = arith.truncf %6 : vector<16x128xf32> to vector<16x128xbf16>
    %c0_5 = arith.constant 0 : index
    %c0_6 = arith.constant 0 : index
    %8 = vector.load %arg1[%c0_5, %c0_6] : memref<16x16xbf16, #tpu.memory_space<vmem>>, vector<16x16xbf16>
    %cst_7 = arith.constant dense<0.000000e+00> : vector<16x128xf32>
    %9 = tpu.matmul %8, %7, %cst_7 {dimension_numbers = #tpu.dot_dimension_numbers<[1], [0], [0], [1], [0, 0, 1, 1], [], []>} : vector<16x16xbf16>, vector<16x128xbf16>, vector<16x128xf32> -> vector<16x128xf32>
    %10 = arith.truncf %9 : vector<16x128xf32> to vector<16x128xbf16>
    %c0_8 = arith.constant 0 : index
    %c0_9 = arith.constant 0 : index
    %11 = vector.load %arg5[%c0_8, %c0_9] : memref<16x384xbf16, #tpu.memory_space<vmem>>, vector<16x384xbf16>
    %cst_10 = arith.constant dense<0.000000e+00> : vector<16x384xf32>
    %12 = tpu.matmul %1, %11, %cst_10 {dimension_numbers = #tpu.dot_dimension_numbers<[1], [0], [0], [1], [0, 0, 1, 1], [], []>} : vector<16x16xbf16>, vector<16x384xbf16>, vector<16x384xf32> -> vector<16x384xf32>
    %c0_11 = arith.constant 0 : index
    %c0_12 = arith.constant 0 : index
    %13 = vector.load %arg6[%c0_11, %c0_12] : memref<1x384xf32, #tpu.memory_space<vmem>>, vector<1x384xf32>
    %14 = vector.broadcast %13 : vector<1x384xf32> to vector<16x384xf32>
    %15 = arith.addf %12, %14 : vector<16x384xf32>
    %c0_13 = arith.constant 0 : index
    %c0_14 = arith.constant 0 : index
    %16 = vector.load %arg7[%c0_13, %c0_14] : memref<128x384xbf16, #tpu.memory_space<vmem>>, vector<128x384xbf16>
    %cst_15 = arith.constant dense<0.000000e+00> : vector<16x384xf32>
    %17 = tpu.matmul %10, %16, %cst_15 {dimension_numbers = #tpu.dot_dimension_numbers<[1], [0], [0], [1], [0, 0, 1, 1], [], []>} : vector<16x128xbf16>, vector<128x384xbf16>, vector<16x384xf32> -> vector<16x384xf32>
    %c0_16 = arith.constant 0 : index
    %c0_17 = arith.constant 0 : index
    %18 = vector.load %arg8[%c0_16, %c0_17] : memref<1x384xf32, #tpu.memory_space<vmem>>, vector<1x384xf32>
    %19 = vector.broadcast %18 : vector<1x384xf32> to vector<16x384xf32>
    %20 = arith.addf %17, %19 : vector<16x384xf32>
    %21 = vector.extract_strided_slice %15 {offsets = [0, 0], sizes = [16, 128], strides = [1, 1]} : vector<16x384xf32> to vector<16x128xf32>
    %22 = vector.extract_strided_slice %20 {offsets = [0, 0], sizes = [16, 128], strides = [1, 1]} : vector<16x384xf32> to vector<16x128xf32>
    %23 = arith.addf %21, %22 : vector<16x128xf32>
    %24 = arith.negf %23 : vector<16x128xf32>
    %25 = math.exp %24 : vector<16x128xf32>
    %cst_18 = arith.constant 1.000000e+00 : f32
    %26 = vector.broadcast %cst_18 : f32 to vector<16x128xf32>
    %27 = arith.addf %26, %25 : vector<16x128xf32>
    %28 = arith.divf %26, %27 : vector<16x128xf32>
    %29 = vector.extract_strided_slice %15 {offsets = [0, 128], sizes = [16, 128], strides = [1, 1]} : vector<16x384xf32> to vector<16x128xf32>
    %30 = vector.extract_strided_slice %20 {offsets = [0, 128], sizes = [16, 128], strides = [1, 1]} : vector<16x384xf32> to vector<16x128xf32>
    %31 = arith.addf %29, %30 : vector<16x128xf32>
    %32 = arith.negf %31 : vector<16x128xf32>
    %33 = math.exp %32 : vector<16x128xf32>
    %cst_19 = arith.constant 1.000000e+00 : f32
    %34 = vector.broadcast %cst_19 : f32 to vector<16x128xf32>
    %35 = arith.addf %34, %33 : vector<16x128xf32>
    %36 = arith.divf %34, %35 : vector<16x128xf32>
    %37 = vector.extract_strided_slice %15 {offsets = [0, 256], sizes = [16, 128], strides = [1, 1]} : vector<16x384xf32> to vector<16x128xf32>
    %38 = vector.extract_strided_slice %20 {offsets = [0, 256], sizes = [16, 128], strides = [1, 1]} : vector<16x384xf32> to vector<16x128xf32>
    %39 = arith.mulf %28, %38 : vector<16x128xf32>
    %40 = arith.addf %37, %39 : vector<16x128xf32>
    %41 = math.tanh %40 : vector<16x128xf32>
    %42 = arith.mulf %36, %41 : vector<16x128xf32>
    %cst_20 = arith.constant 1.000000e+00 : f32
    %43 = vector.broadcast %cst_20 : f32 to vector<16x128xf32>
    %44 = arith.subf %43, %36 : vector<16x128xf32>
    %45 = arith.mulf %44, %6 : vector<16x128xf32>
    %46 = arith.addf %42, %45 : vector<16x128xf32>
    %c0_21 = arith.constant 0 : index
    %c0_22 = arith.constant 0 : index
    %47 = vector.load %arg9[%c0_21, %c0_22] : memref<16x128xf32, #tpu.memory_space<vmem>>, vector<16x128xf32>
    tpu.vector_store %arg9[%c0_21, %c0_22], %46 {strides = array<i32>} : memref<16x128xf32, #tpu.memory_space<vmem>>, vector<16x128xf32>,
    return
  }
  func.func @transform_0(%arg0: i32) -> (i32, i32) {
    %c0_i32 = arith.constant 0 : i32
    %c0_i32_0 = arith.constant 0 : i32
    return %arg0, %c0_i32 : i32, i32
  }
  func.func @transform_1(%arg0: i32) -> (i32, i32) {
    %c0_i32 = arith.constant 0 : i32
    %c0_i32_0 = arith.constant 0 : i32
    return %arg0, %c0_i32 : i32, i32
  }
  func.func @transform_2(%arg0: i32) -> (i32, i32) {
    %c0_i32 = arith.constant 0 : i32
    %c0_i32_0 = arith.constant 0 : i32
    %c0_i32_1 = arith.constant 0 : i32
    return %c0_i32, %c0_i32_0 : i32, i32
  }
  func.func @transform_3(%arg0: i32) -> (i32, i32) {
    %c0_i32 = arith.constant 0 : i32
    %c0_i32_0 = arith.constant 0 : i32
    %c0_i32_1 = arith.constant 0 : i32
    return %c0_i32, %c0_i32_0 : i32, i32
  }
  func.func @transform_4(%arg0: i32) -> (i32, i32) {
    %c0_i32 = arith.constant 0 : i32
    %c0_i32_0 = arith.constant 0 : i32
    %c0_i32_1 = arith.constant 0 : i32
    return %c0_i32, %c0_i32_0 : i32, i32
  }
  func.func @transform_5(%arg0: i32) -> (i32, i32) {
    %c0_i32 = arith.constant 0 : i32
    %c0_i32_0 = arith.constant 0 : i32
    %c0_i32_1 = arith.constant 0 : i32
    return %c0_i32, %c0_i32_0 : i32, i32
  }
  func.func @transform_6(%arg0: i32) -> (i32, i32) {
    %c0_i32 = arith.constant 0 : i32
    %c0_i32_0 = arith.constant 0 : i32
    %c0_i32_1 = arith.constant 0 : i32
    return %c0_i32, %c0_i32_0 : i32, i32
  }
  func.func @transform_7(%arg0: i32) -> (i32, i32) {
    %c0_i32 = arith.constant 0 : i32
    %c0_i32_0 = arith.constant 0 : i32
    %c0_i32_1 = arith.constant 0 : i32
    return %c0_i32, %c0_i32_0 : i32, i32
  }
  func.func @transform_8(%arg0: i32) -> (i32, i32) {
    %c0_i32 = arith.constant 0 : i32
    %c0_i32_0 = arith.constant 0 : i32
    return %arg0, %c0_i32 : i32, i32
  }
}

module attributes {stable_mosaic.version = 11 : i64} {
  func.func @gcn_kernel(%arg0: i32, %arg1: memref<16x16xbf16, #tpu.memory_space<vmem>>, %arg2: memref<16x16xf32, #tpu.memory_space<vmem>>, %arg3: memref<16x128xbf16, #tpu.memory_space<vmem>>, %arg4: memref<1x128xf32, #tpu.memory_space<vmem>>, %arg5: memref<16x384xbf16, #tpu.memory_space<vmem>>, %arg6: memref<1x384xf32, #tpu.memory_space<vmem>>, %arg7: memref<128x384xbf16, #tpu.memory_space<vmem>>, %arg8: memref<1x384xf32, #tpu.memory_space<vmem>>, %arg9: memref<16x128xf32, #tpu.memory_space<vmem>>) attributes {dimension_semantics = [#tpu.dimension_semantics<parallel>], iteration_bounds = array<i64: 1>, scalar_prefetch = 0 : i64, scratch_operands = 0 : i64, tpu.core_type = #tpu.core_type<tc>, window_params = [{transform_indices = @transform_0, window_bounds = array<i64: 16, 16>}, {transform_indices = @transform_1, window_bounds = array<i64: 16, 16>}, {pipeline_mode = #tpu.pipeline_mode<synchronous>, transform_indices = @transform_2, window_bounds = array<i64: 16, 128>}, {pipeline_mode = #tpu.pipeline_mode<synchronous>, transform_indices = @transform_3, window_bounds = array<i64: 1, 128>}, {pipeline_mode = #tpu.pipeline_mode<synchronous>, transform_indices = @transform_4, window_bounds = array<i64: 16, 384>}, {pipeline_mode = #tpu.pipeline_mode<synchronous>, transform_indices = @transform_5, window_bounds = array<i64: 1, 384>}, {pipeline_mode = #tpu.pipeline_mode<synchronous>, transform_indices = @transform_6, window_bounds = array<i64: 128, 384>}, {pipeline_mode = #tpu.pipeline_mode<synchronous>, transform_indices = @transform_7, window_bounds = array<i64: 1, 384>}, {transform_indices = @transform_8, window_bounds = array<i64: 16, 128>}]} {
    %c0 = arith.constant 0 : index
    %c0_0 = arith.constant 0 : index
    %0 = vector.load %arg2[%c0, %c0_0] : memref<16x16xf32, #tpu.memory_space<vmem>>, vector<16x16xf32>
    %1 = arith.truncf %0 : vector<16x16xf32> to vector<16x16xbf16>
    %c0_1 = arith.constant 0 : index
    %c0_2 = arith.constant 0 : index
    %2 = vector.load %arg3[%c0_1, %c0_2] : memref<16x128xbf16, #tpu.memory_space<vmem>>, vector<16x128xbf16>
    %cst = arith.constant dense<0.000000e+00> : vector<16x128xf32>
    %3 = tpu.matmul %1, %2, %cst {dimension_numbers = #tpu.dot_dimension_numbers<[1], [0], [0], [1], [0, 0, 1, 1], [], []>} : vector<16x16xbf16>, vector<16x128xbf16>, vector<16x128xf32> -> vector<16x128xf32>
    %c0_3 = arith.constant 0 : index
    %c0_4 = arith.constant 0 : index
    %4 = vector.load %arg4[%c0_3, %c0_4] : memref<1x128xf32, #tpu.memory_space<vmem>>, vector<1x128xf32>
    %5 = vector.broadcast %4 : vector<1x128xf32> to vector<16x128xf32>
    %6 = arith.addf %3, %5 : vector<16x128xf32>
    %7 = arith.truncf %6 : vector<16x128xf32> to vector<16x128xbf16>
    %c0_5 = arith.constant 0 : index
    %c0_6 = arith.constant 0 : index
    %8 = vector.load %arg1[%c0_5, %c0_6] : memref<16x16xbf16, #tpu.memory_space<vmem>>, vector<16x16xbf16>
    %cst_7 = arith.constant dense<0.000000e+00> : vector<16x128xf32>
    %9 = tpu.matmul %8, %7, %cst_7 {dimension_numbers = #tpu.dot_dimension_numbers<[1], [0], [0], [1], [0, 0, 1, 1], [], []>} : vector<16x16xbf16>, vector<16x128xbf16>, vector<16x128xf32> -> vector<16x128xf32>
    %10 = arith.truncf %9 : vector<16x128xf32> to vector<16x128xbf16>
    %c0_8 = arith.constant 0 : index
    %c0_9 = arith.constant 0 : index
    %11 = vector.load %arg5[%c0_8, %c0_9] : memref<16x384xbf16, #tpu.memory_space<vmem>>, vector<16x384xbf16>
    %cst_10 = arith.constant dense<0.000000e+00> : vector<16x384xf32>
    %12 = tpu.matmul %1, %11, %cst_10 {dimension_numbers = #tpu.dot_dimension_numbers<[1], [0], [0], [1], [0, 0, 1, 1], [], []>} : vector<16x16xbf16>, vector<16x384xbf16>, vector<16x384xf32> -> vector<16x384xf32>
    %c0_11 = arith.constant 0 : index
    %c0_12 = arith.constant 0 : index
    %13 = vector.load %arg6[%c0_11, %c0_12] : memref<1x384xf32, #tpu.memory_space<vmem>>, vector<1x384xf32>
    %14 = vector.broadcast %13 : vector<1x384xf32> to vector<16x384xf32>
    %15 = arith.addf %12, %14 : vector<16x384xf32>
    %c0_13 = arith.constant 0 : index
    %c0_14 = arith.constant 0 : index
    %16 = vector.load %arg7[%c0_13, %c0_14] : memref<128x384xbf16, #tpu.memory_space<vmem>>, vector<128x384xbf16>
    %cst_15 = arith.constant dense<0.000000e+00> : vector<16x384xf32>
    %17 = tpu.matmul %10, %16, %cst_15 {dimension_numbers = #tpu.dot_dimension_numbers<[1], [0], [0], [1], [0, 0, 1, 1], [], []>} : vector<16x128xbf16>, vector<128x384xbf16>, vector<16x384xf32> -> vector<16x384xf32>
    %c0_16 = arith.constant 0 : index
    %c0_17 = arith.constant 0 : index
    %18 = vector.load %arg8[%c0_16, %c0_17] : memref<1x384xf32, #tpu.memory_space<vmem>>, vector<1x384xf32>
    %19 = vector.broadcast %18 : vector<1x384xf32> to vector<16x384xf32>
    %20 = arith.addf %17, %19 : vector<16x384xf32>
    %21 = vector.extract_strided_slice %15 {offsets = [0, 0], sizes = [16, 128], strides = [1, 1]} : vector<16x384xf32> to vector<16x128xf32>
    %22 = vector.extract_strided_slice %20 {offsets = [0, 0], sizes = [16, 128], strides = [1, 1]} : vector<16x384xf32> to vector<16x128xf32>
    %23 = arith.addf %21, %22 : vector<16x128xf32>
    %24 = arith.negf %23 : vector<16x128xf32>
    %25 = math.exp %24 : vector<16x128xf32>
    %cst_18 = arith.constant 1.000000e+00 : f32
    %26 = vector.broadcast %cst_18 : f32 to vector<16x128xf32>
    %27 = arith.addf %26, %25 : vector<16x128xf32>
    %28 = arith.divf %26, %27 : vector<16x128xf32>
    %29 = vector.extract_strided_slice %15 {offsets = [0, 128], sizes = [16, 128], strides = [1, 1]} : vector<16x384xf32> to vector<16x128xf32>
    %30 = vector.extract_strided_slice %20 {offsets = [0, 128], sizes = [16, 128], strides = [1, 1]} : vector<16x384xf32> to vector<16x128xf32>
    %31 = arith.addf %29, %30 : vector<16x128xf32>
    %32 = arith.negf %31 : vector<16x128xf32>
    %33 = math.exp %32 : vector<16x128xf32>
    %cst_19 = arith.constant 1.000000e+00 : f32
    %34 = vector.broadcast %cst_19 : f32 to vector<16x128xf32>
    %35 = arith.addf %34, %33 : vector<16x128xf32>
    %36 = arith.divf %34, %35 : vector<16x128xf32>
    %37 = vector.extract_strided_slice %15 {offsets = [0, 256], sizes = [16, 128], strides = [1, 1]} : vector<16x384xf32> to vector<16x128xf32>
    %38 = vector.extract_strided_slice %20 {offsets = [0, 256], sizes = [16, 128], strides = [1, 1]} : vector<16x384xf32> to vector<16x128xf32>
    %39 = arith.mulf %28, %38 : vector<16x128xf32>
    %40 = arith.addf %37, %39 : vector<16x128xf32>
    %41 = math.tanh %40 : vector<16x128xf32>
    %42 = arith.mulf %36, %41 : vector<16x128xf32>
    %cst_20 = arith.constant 1.000000e+00 : f32
    %43 = vector.broadcast %cst_20 : f32 to vector<16x128xf32>
    %44 = arith.subf %43, %36 : vector<16x128xf32>
    %45 = arith.mulf %44, %6 : vector<16x128xf32>
    %46 = arith.addf %42, %45 : vector<16x128xf32>
    %c0_21 = arith.constant 0 : index
    %c0_22 = arith.constant 0 : index
    %47 = vector.load %arg9[%c0_21, %c0_22] : memref<16x128xf32, #tpu.memory_space<vmem>>, vector<16x128xf32>
    tpu.vector_store %arg9[%c0_21, %c0_22], %46 {strides = array<i32>} : memref<16x128xf32, #tpu.memory_space<vmem>>, vector<16x128xf32>,
    return
  }
  func.func @transform_0(%arg0: i32) -> (i32, i32) {
    %c0_i32 = arith.constant 0 : i32
    %c0_i32_0 = arith.constant 0 : i32
    return %arg0, %c0_i32 : i32, i32
  }
  func.func @transform_1(%arg0: i32) -> (i32, i32) {
    %c0_i32 = arith.constant 0 : i32
    %c0_i32_0 = arith.constant 0 : i32
    return %arg0, %c0_i32 : i32, i32
  }
  func.func @transform_2(%arg0: i32) -> (i32, i32) {
    %c0_i32 = arith.constant 0 : i32
    %c0_i32_0 = arith.constant 0 : i32
    %c0_i32_1 = arith.constant 0 : i32
    return %c0_i32, %c0_i32_0 : i32, i32
  }
  func.func @transform_3(%arg0: i32) -> (i32, i32) {
    %c0_i32 = arith.constant 0 : i32
    %c0_i32_0 = arith.constant 0 : i32
    %c0_i32_1 = arith.constant 0 : i32
    return %c0_i32, %c0_i32_0 : i32, i32
  }
  func.func @transform_4(%arg0: i32) -> (i32, i32) {
    %c0_i32 = arith.constant 0 : i32
    %c0_i32_0 = arith.constant 0 : i32
    %c0_i32_1 = arith.constant 0 : i32
    return %c0_i32, %c0_i32_0 : i32, i32
  }
  func.func @transform_5(%arg0: i32) -> (i32, i32) {
    %c0_i32 = arith.constant 0 : i32
    %c0_i32_0 = arith.constant 0 : i32
    %c0_i32_1 = arith.constant 0 : i32
    return %c0_i32, %c0_i32_0 : i32, i32
  }
  func.func @transform_6(%arg0: i32) -> (i32, i32) {
    %c0_i32 = arith.constant 0 : i32
    %c0_i32_0 = arith.constant 0 : i32
    %c0_i32_1 = arith.constant 0 : i32
    return %c0_i32, %c0_i32_0 : i32, i32
  }
  func.func @transform_7(%arg0: i32) -> (i32, i32) {
    %c0_i32 = arith.constant 0 : i32
    %c0_i32_0 = arith.constant 0 : i32
    %c0_i32_1 = arith.constant 0 : i32
    return %c0_i32, %c0_i32_0 : i32, i32
  }
  func.func @transform_8(%arg0: i32) -> (i32, i32) {
    %c0_i32 = arith.constant 0 : i32
    %c0_i32_0 = arith.constant 0 : i32
    return %arg0, %c0_i32 : i32, i32
  }
}

</mosaic_0001>

<llo_original>
// kernel: tpu_custom_call.1
$region0: #{tpu_custom_call.1}
  #allocation0 [shape = 'u32[]', space=smem, size = 0x4, offset = 0x4, fixed_abs, tag = 'smem constant byte address 0x4 - core index']
  #allocation1 [shape = 'u32[144,128]{1,0:T(1,128)}', space=vmem, size = 0x12000, scoped, tag = 'internal scratch']
  %s0 = inlined_call_operand.hbm [shape: bf16[16,16], index: 0, kind: input, shape index: {}]
  %s1 = inlined_call_operand.hbm [shape: f32[16,16], index: 1, kind: input, shape index: {}]
  %s2 = inlined_call_operand.hbm [shape: bf16[16,128], index: 2, kind: input, shape index: {}]
  %s3 = inlined_call_operand.vmem [shape: f32[1,128], index: 3, kind: input, shape index: {}]
  %s4 = inlined_call_operand.hbm [shape: bf16[16,384], index: 4, kind: input, shape index: {}]
  %s5 = inlined_call_operand.vmem [shape: f32[1,384], index: 5, kind: input, shape index: {}]
  %s6 = inlined_call_operand.hbm [shape: bf16[128,384], index: 6, kind: input, shape index: {}]
  %s7 = inlined_call_operand.vmem [shape: f32[1,384], index: 7, kind: input, shape index: {}]
  %s8 = inlined_call_operand.hbm [shape: f32[16,128], index: 8, kind: output, shape index: {}]
  %s9 = sld [smem:[#allocation0]]
  $region62: #{tpu_custom_call.1} parent=0
    _
  %s11 = ssub.s32 1, %s9
  %s12 = scalar_select 0, %s11, %s9
  $region1: #{tpu_custom_call.1} parent=0
    #allocation2 [shape = 'u8[4096]{0}', space=vmem, size = 0x1000, scoped, tag = 'input window, operand 0, single buffered']
    #allocation3 [shape = 's32[1]{0}', space=sflag, size = 0x4, scoped, tag = 'scoped memory for tpu_custom_call.1']
    #allocation4 [shape = 's32[1]{0}', space=sflag, size = 0x4, scoped, tag = 'scoped memory for tpu_custom_call.1']
    #allocation5 [shape = 'u8[8192]{0}', space=vmem, size = 0x2000, scoped, tag = 'input window, operand 1, single buffered']
    #allocation6 [shape = 's32[1]{0}', space=sflag, size = 0x4, scoped, tag = 'scoped memory for tpu_custom_call.1']
    #allocation7 [shape = 'u8[4096]{0}', space=vmem, size = 0x1000, scoped, tag = 'input window, operand 2, single buffered']
    #allocation8 [shape = 'u8[12288]{0}', space=vmem, size = 0x3000, scoped, tag = 'input window, operand 4, single buffered']
    #allocation9 [shape = 's32[1]{0}', space=sflag, size = 0x4, scoped, tag = 'scoped memory for tpu_custom_call.1']
    #allocation10 [shape = 'u8[98304]{0}', space=vmem, size = 0x18000, scoped, tag = 'input window, operand 6, single buffered']
    #allocation11 [shape = 'u8[8192]{0}', space=vmem, size = 0x2000, scoped, tag = 'output window, operand 0, single buffered']
    %13 = vsyncpa [#allocation3], 0
    %14 = vsyncpa [#allocation6], 0
    %15 = vsyncpa [#allocation9], 0
    %16 = vsyncpa [#allocation4], 0
    // Predicated region
    $region2: #{tpu_custom_call.1} parent=1 // pred_check
      _
    $region3: #{tpu_custom_call.1} parent=1 // pred_check_branch
      %18 = sbr.rel (0) target = $region5
    $region4: #{tpu_custom_call.1} parent=1 // pred_region
      %s20 = ssub.s32 128, 128
      %21 = vsyncadd [#allocation3], %s20
      %s22 = sshll.u32 [#allocation2], 4
      %s23 = int_to_ptr.vmem [resolvable:$true] %s22
      %28 = dma.hbm_to_vmem [thread:$0]  %s0, 128, %s23, [#allocation3], 64, 64, 4
    $region5: #{tpu_custom_call.1} parent=1 // pred_fallthru
      _
    // Predicated region
    $region6: #{tpu_custom_call.1} parent=1 // pred_check
      _
    $region7: #{tpu_custom_call.1} parent=1 // pred_check_branch
      %30 = sbr.rel (0) target = $region9
    $region8: #{tpu_custom_call.1} parent=1 // pred_region
      %s32 = ssub.s32 256, 256
      %33 = vsyncadd [#allocation6], %s32
      %s34 = sshll.u32 [#allocation5], 4
      %s35 = int_to_ptr.vmem [resolvable:$true] %s34
      %40 = dma.hbm_to_vmem [thread:$0]  %s1, 256, %s35, [#allocation6], 128, 128, 8
    $region9: #{tpu_custom_call.1} parent=1 // pred_fallthru
      _
    // Predicated region
    $region10: #{tpu_custom_call.1} parent=1 // pred_check
      _
    $region11: #{tpu_custom_call.1} parent=1 // pred_check_branch
      %42 = sbr.rel (0) target = $region13
    $region12: #{tpu_custom_call.1} parent=1 // pred_region
      %s44 = ssub.s32 128, 128
      %45 = vsyncadd [#allocation6], %s44
      %s46 = sshll.u32 [#allocation7], 4
      %s47 = int_to_ptr.vmem [resolvable:$true] %s46
      %52 = dma.hbm_to_vmem [thread:$0]  %s2, 128, %s47, [#allocation6], 64, 64, 4
    $region13: #{tpu_custom_call.1} parent=1 // pred_fallthru
      _
    // Predicated region
    $region14: #{tpu_custom_call.1} parent=1 // pred_check
      _
    $region15: #{tpu_custom_call.1} parent=1 // pred_check_branch
      %54 = sbr.rel (0) target = $region17
    $region16: #{tpu_custom_call.1} parent=1 // pred_region
      _
    $region17: #{tpu_custom_call.1} parent=1 // pred_fallthru
      _
    // Predicated region
    $region18: #{tpu_custom_call.1} parent=1 // pred_check
      _
    $region19: #{tpu_custom_call.1} parent=1 // pred_check_branch
      %56 = sbr.rel (0) target = $region21
    $region20: #{tpu_custom_call.1} parent=1 // pred_region
      %s58 = ssub.s32 384, 384
      %59 = vsyncadd [#allocation9], %s58
      %s60 = sshll.u32 [#allocation8], 4
      %s61 = int_to_ptr.vmem [resolvable:$true] %s60
      %66 = dma.hbm_to_vmem [thread:$0]  %s4, 384, %s61, [#allocation9], 192, 192, 12
    $region21: #{tpu_custom_call.1} parent=1 // pred_fallthru
      _
    // Predicated region
    $region22: #{tpu_custom_call.1} parent=1 // pred_check
      _
    $region23: #{tpu_custom_call.1} parent=1 // pred_check_branch
      %68 = sbr.rel (0) target = $region25
    $region24: #{tpu_custom_call.1} parent=1 // pred_region
      _
    $region25: #{tpu_custom_call.1} parent=1 // pred_fallthru
      _
    // Predicated region
    $region26: #{tpu_custom_call.1} parent=1 // pred_check
      _
    $region27: #{tpu_custom_call.1} parent=1 // pred_check_branch
      %70 = sbr.rel (0) target = $region29
    $region28: #{tpu_custom_call.1} parent=1 // pred_region
      %s72 = ssub.s32 3072, 3072
      %73 = vsyncadd [#allocation9], %s72
      %s74 = sshll.u32 [#allocation10], 4
      %s75 = int_to_ptr.vmem [resolvable:$true] %s74
      %80 = dma.hbm_to_vmem [thread:$0]  %s6, 3072, %s75, [#allocation9], 192, 192, 12
    $region29: #{tpu_custom_call.1} parent=1 // pred_fallthru
      _
    // Predicated region
    $region30: #{tpu_custom_call.1} parent=1 // pred_check
      _
    $region31: #{tpu_custom_call.1} parent=1 // pred_check_branch
      %82 = sbr.rel (0) target = $region33
    $region32: #{tpu_custom_call.1} parent=1 // pred_region
      _
    $region33: #{tpu_custom_call.1} parent=1 // pred_fallthru
      _
    // Predicated region
    $region34: #{tpu_custom_call.1} parent=1 // pred_check
      _
    $region35: #{tpu_custom_call.1} parent=1 // pred_check_branch
      %84 = sbr.rel (0) target = $region37
    $region36: #{tpu_custom_call.1} parent=1 // pred_region
      %85 = dma.done [#allocation3], 128
    $region37: #{tpu_custom_call.1} parent=1 // pred_fallthru
      _
    // Predicated region
    $region38: #{tpu_custom_call.1} parent=1 // pred_check
      _
    $region39: #{tpu_custom_call.1} parent=1 // pred_check_branch
      %87 = sbr.rel (0) target = $region41
    $region40: #{tpu_custom_call.1} parent=1 // pred_region
      %88 = dma.done [#allocation6], 256
    $region41: #{tpu_custom_call.1} parent=1 // pred_fallthru
      _
    // Predicated region
    $region42: #{tpu_custom_call.1} parent=1 // pred_check
      _
    $region43: #{tpu_custom_call.1} parent=1 // pred_check_branch
      %90 = sbr.rel (0) target = $region45
    $region44: #{tpu_custom_call.1} parent=1 // pred_region
      %91 = dma.done [#allocation6], 128
    $region45: #{tpu_custom_call.1} parent=1 // pred_fallthru
      _
    // Predicated region
    $region46: #{tpu_custom_call.1} parent=1 // pred_check
      _
    $region47: #{tpu_custom_call.1} parent=1 // pred_check_branch
      %93 = sbr.rel (0) target = $region49
    $region48: #{tpu_custom_call.1} parent=1 // pred_region
      %94 = dma.done [#allocation9], 384
    $region49: #{tpu_custom_call.1} parent=1 // pred_fallthru
      _
    // Predicated region
    $region50: #{tpu_custom_call.1} parent=1 // pred_check
      _
    $region51: #{tpu_custom_call.1} parent=1 // pred_check_branch
      %96 = sbr.rel (0) target = $region53
    $region52: #{tpu_custom_call.1} parent=1 // pred_region
      %97 = dma.done [#allocation9], 3072
    $region53: #{tpu_custom_call.1} parent=1 // pred_fallthru
      _
    %v99 = vld [vmem:[#allocation5] sm:$0xff]
    %v100 = vld [vmem:[#allocation5 + $0x8] sm:$0xff]
    %v101 = vpack.c.bf16 %v100, %v99
    %v102 = vld [vmem:[#allocation7] sm:$0xf]
    %v103 = vld [vmem:[#allocation7 + $0x4] sm:$0xf]
    %v104 = vld [vmem:[%s3] sm:$0x1]
    %v106 = vlaneseq
    %v107 = vshrl.u32 %v106, 7
    %v108 = vsub.s32 0, %v107
    %v109 = vrot.slane %v104, %v108
    %v113 = vunpack.c.l.b16 %v102
    %v114 = vunpack.c.l.b16 %v103
    %v115 = vpack.c.b16 %v114, %v113
    %vm117 = vcmask 130048
    %v119 = vsel %vm117, %v101, 0
    %121 = vmatprep.subr.bf16.mxu0 0
    %122 = vmatpush1.bf16.msra.mxu0 %v115
    %123 = vmatprep.subr.bf16.mxu0 0
    %124 = vmatpush1.bf16.msra.mxu0 0
    %125 = vmatprep.subr.bf16.mxu0 0
    %126 = vmatpush1.bf16.msra.mxu0 0
    %127 = vmatprep.subr.bf16.mxu0 0
    %128 = vmatpush1.bf16.msra.mxu0 0
    %129 = vmatprep.subr.bf16.mxu0 0
    %130 = vmatpush1.bf16.msra.mxu0 0
    %131 = vmatprep.subr.bf16.mxu0 0
    %132 = vmatpush1.bf16.msra.mxu0 0
    %133 = vmatprep.subr.bf16.mxu0 0
    %134 = vmatpush1.bf16.msra.mxu0 0
    %135 = vmatprep.subr.bf16.mxu0 0
    %136 = vmatpush1.bf16.msra.mxu0 0
    %137 = vmatprep.subr.bf16.mxu0 0
    %138 = vmatpush1.bf16.msra.mxu0 0
    %139 = vmatprep.subr.bf16.mxu0 0
    %140 = vmatpush1.bf16.msra.mxu0 0
    %141 = vmatprep.subr.bf16.mxu0 0
    %142 = vmatpush1.bf16.msra.mxu0 0
    %143 = vmatprep.subr.bf16.mxu0 0
    %144 = vmatpush1.bf16.msra.mxu0 0
    %145 = vmatprep.subr.bf16.mxu0 0
    %146 = vmatpush1.bf16.msra.mxu0 0
    %147 = vmatprep.subr.bf16.mxu0 0
    %148 = vmatpush1.bf16.msra.mxu0 0
    %149 = vmatprep.subr.bf16.mxu0 0
    %150 = vmatpush1.bf16.msra.mxu0 0
    %151 = vmatprep.subr.bf16.mxu0 0
    %152 = vmatpush1.bf16.msra.mxu0 0
    %153 = vmatprep.mubr.bf16.mxu0 0
    %154 = vmatmul.mubr.bf16.gmra.mrb[0].mxu0 %v119
    %v155 = vpop.f32.mrb[0].mxu0
    %v156 = vadd.f32 %v109, %v155
    %v157 = vpop.f32.mrb[0].mxu0
    %v158 = vpop.f32.mrb[0].mxu0
    %v159 = vadd.f32 %v109, %v158
    %v160 = vpop.f32.mrb[0].mxu0
    %161 = vdwg.mxu0
    %v162 = vpack.c.bf16 %v159, %v156
    %v163 = vld [vmem:[#allocation2] sm:$0xf]
    %v164 = vld [vmem:[#allocation2 + $0x4] sm:$0xf]
    %v167 = vunpack.c.l.b16 %v163
    %v168 = vunpack.c.l.b16 %v164
    %v169 = vpack.c.b16 %v168, %v167
    %v171 = vsel %vm117, %v169, 0
    %173 = vmatprep.subr.bf16.mxu0 0
    %174 = vmatpush1.bf16.msra.mxu0 %v162
    %175 = vmatprep.subr.bf16.mxu0 0
    %176 = vmatpush1.bf16.msra.mxu0 0
    %177 = vmatprep.subr.bf16.mxu0 0
    %178 = vmatpush1.bf16.msra.mxu0 0
    %179 = vmatprep.subr.bf16.mxu0 0
    %180 = vmatpush1.bf16.msra.mxu0 0
    %181 = vmatprep.subr.bf16.mxu0 0
    %182 = vmatpush1.bf16.msra.mxu0 0
    %183 = vmatprep.subr.bf16.mxu0 0
    %184 = vmatpush1.bf16.msra.mxu0 0
    %185 = vmatprep.subr.bf16.mxu0 0
    %186 = vmatpush1.bf16.msra.mxu0 0
    %187 = vmatprep.subr.bf16.mxu0 0
    %188 = vmatpush1.bf16.msra.mxu0 0
    %189 = vmatprep.subr.bf16.mxu0 0
    %190 = vmatpush1.bf16.msra.mxu0 0
    %191 = vmatprep.subr.bf16.mxu0 0
    %192 = vmatpush1.bf16.msra.mxu0 0
    %193 = vmatprep.subr.bf16.mxu0 0
    %194 = vmatpush1.bf16.msra.mxu0 0
    %195 = vmatprep.subr.bf16.mxu0 0
    %196 = vmatpush1.bf16.msra.mxu0 0
    %197 = vmatprep.subr.bf16.mxu0 0
    %198 = vmatpush1.bf16.msra.mxu0 0
    %199 = vmatprep.subr.bf16.mxu0 0
    %200 = vmatpush1.bf16.msra.mxu0 0
    %201 = vmatprep.subr.bf16.mxu0 0
    %202 = vmatpush1.bf16.msra.mxu0 0
    %203 = vmatprep.subr.bf16.mxu0 0
    %204 = vmatpush1.bf16.msra.mxu0 0
    %205 = vmatprep.mubr.bf16.mxu0 0
    %206 = vmatmul.mubr.bf16.gmra.mrb[0].mxu0 %v171
    %v207 = vpop.f32.mrb[0].mxu0
    %v208 = vadd.f32 0.0, %v207
    %v209 = vpop.f32.mrb[0].mxu0
    %v210 = vpop.f32.mrb[0].mxu0
    %v211 = vadd.f32 0.0, %v210
    %v212 = vpop.f32.mrb[0].mxu0
    %213 = vdwg.mxu0
    %v214 = vpack.c.bf16 %v211, %v208
    %v215 = vld [vmem:[#allocation8] sm:$0xff]
    %v216 = vld [vmem:[#allocation8 + $0x8] sm:$0xf]
    %v217 = vld [vmem:[#allocation8 + $0xc] sm:$0xff]
    %v218 = vld [vmem:[#allocation8 + $0x14] sm:$0xf]
    %v219 = vld [vmem:[%s5] sm:$0x7]
    %v221 = vlaneseq
    %v222 = vshrl.u32 %v221, 7
    %v223 = vsub.s32 0, %v222
    %v224 = vrot.slane %v219, %v223
    %v225 = vlaneseq
    %v226 = vshrl.u32 %v225, 7
    %v227 = vsub.s32 1, %v226
    %v228 = vrot.slane %v219, %v227
    %v229 = vlaneseq
    %v230 = vshrl.u32 %v229, 7
    %v231 = vsub.s32 2, %v230
    %v232 = vrot.slane %v219, %v231
    %v240 = vunpack.c.l.b16 %v215
    %v241 = vunpack.c.h.b16 %v215
    %v242 = vunpack.c.l.b16 %v216
    %v243 = vunpack.c.l.b16 %v217
    %v244 = vunpack.c.h.b16 %v217
    %v245 = vunpack.c.l.b16 %v218
    %v246 = vpack.c.b16 %v243, %v240
    %v247 = vpack.c.b16 %v244, %v241
    %v248 = vpack.c.b16 %v245, %v242
    %252 = vmatprep.subr.bf16.mxu0 %v247
    %253 = vmatpush1.bf16.msra.mxu0 %v246
    %254 = vmatprep.subr.bf16.mxu0 0
    %255 = vmatpush1.bf16.msra.mxu0 0
    %256 = vmatprep.subr.bf16.mxu0 0
    %257 = vmatpush1.bf16.msra.mxu0 0
    %258 = vmatprep.subr.bf16.mxu0 0
    %259 = vmatpush1.bf16.msra.mxu0 0
    %260 = vmatprep.subr.bf16.mxu0 0
    %261 = vmatpush1.bf16.msra.mxu0 0
    %262 = vmatprep.subr.bf16.mxu0 0
    %263 = vmatpush1.bf16.msra.mxu0 0
    %264 = vmatprep.subr.bf16.mxu0 0
    %265 = vmatpush1.bf16.msra.mxu0 0
    %266 = vmatprep.subr.bf16.mxu0 0
    %267 = vmatpush1.bf16.msra.mxu0 0
    %268 = vmatprep.subr.bf16.mxu0 0
    %269 = vmatpush1.bf16.msra.mxu0 0
    %270 = vmatprep.subr.bf16.mxu0 0
    %271 = vmatpush1.bf16.msra.mxu0 0
    %272 = vmatprep.subr.bf16.mxu0 0
    %273 = vmatpush1.bf16.msra.mxu0 0
    %274 = vmatprep.subr.bf16.mxu0 0
    %275 = vmatpush1.bf16.msra.mxu0 0
    %276 = vmatprep.subr.bf16.mxu0 0
    %277 = vmatpush1.bf16.msra.mxu0 0
    %278 = vmatprep.subr.bf16.mxu0 0
    %279 = vmatpush1.bf16.msra.mxu0 0
    %280 = vmatprep.subr.bf16.mxu0 0
    %281 = vmatpush1.bf16.msra.mxu0 0
    %282 = vmatprep.subr.bf16.mxu0 0
    %283 = vmatpush1.bf16.msra.mxu0 0
    %284 = vmatprep.mubr.bf16.mxu0 0
    %285 = vmatmul.mubr.bf16.gmra.mrb[0].mxu0 %v119
    %v286 = vpop.f32.mrb[0].mxu0
    %v287 = vadd.f32 %v224, %v286
    %v288 = vpop.f32.mrb[0].mxu0
    %v289 = vadd.f32 %v228, %v288
    %v290 = vpop.f32.mrb[0].mxu0
    %v291 = vadd.f32 %v224, %v290
    %v292 = vpop.f32.mrb[0].mxu0
    %v293 = vadd.f32 %v228, %v292
    %294 = vdwg.mxu0
    %295 = vmatprep.subr.bf16.mxu0 0
    %296 = vmatpush1.bf16.msra.mxu0 %v248
    %297 = vmatprep.subr.bf16.mxu0 0
    %298 = vmatpush1.bf16.msra.mxu0 0
    %299 = vmatprep.subr.bf16.mxu0 0
    %300 = vmatpush1.bf16.msra.mxu0 0
    %301 = vmatprep.subr.bf16.mxu0 0
    %302 = vmatpush1.bf16.msra.mxu0 0
    %303 = vmatprep.subr.bf16.mxu0 0
    %304 = vmatpush1.bf16.msra.mxu0 0
    %305 = vmatprep.subr.bf16.mxu0 0
    %306 = vmatpush1.bf16.msra.mxu0 0
    %307 = vmatprep.subr.bf16.mxu0 0
    %308 = vmatpush1.bf16.msra.mxu0 0
    %309 = vmatprep.subr.bf16.mxu0 0
    %310 = vmatpush1.bf16.msra.mxu0 0
    %311 = vmatprep.subr.bf16.mxu0 0
    %312 = vmatpush1.bf16.msra.mxu0 0
    %313 = vmatprep.subr.bf16.mxu0 0
    %314 = vmatpush1.bf16.msra.mxu0 0
    %315 = vmatprep.subr.bf16.mxu0 0
    %316 = vmatpush1.bf16.msra.mxu0 0
    %317 = vmatprep.subr.bf16.mxu0 0
    %318 = vmatpush1.bf16.msra.mxu0 0
    %319 = vmatprep.subr.bf16.mxu0 0
    %320 = vmatpush1.bf16.msra.mxu0 0
    %321 = vmatprep.subr.bf16.mxu0 0
    %322 = vmatpush1.bf16.msra.mxu0 0
    %323 = vmatprep.subr.bf16.mxu0 0
    %324 = vmatpush1.bf16.msra.mxu0 0
    %325 = vmatprep.subr.bf16.mxu0 0
    %326 = vmatpush1.bf16.msra.mxu0 0
    %327 = vmatprep.mubr.bf16.mxu0 0
    %328 = vmatmul.mubr.bf16.gmra.mrb[0].mxu0 %v119
    %v329 = vpop.f32.mrb[0].mxu0
    %v330 = vadd.f32 %v232, %v329
    %v331 = vpop.f32.mrb[0].mxu0
    %v332 = vpop.f32.mrb[0].mxu0
    %v333 = vadd.f32 %v232, %v332
    %v334 = vpop.f32.mrb[0].mxu0
    %335 = vdwg.mxu0
    %v336 = vld [vmem:[#allocation10] sm:$0xff]
    %v337 = vld [vmem:[#allocation10 + $0x8] sm:$0xf]
    %v338 = vld [vmem:[#allocation10 + $0xc] sm:$0xff]
    %v339 = vld [vmem:[#allocation10 + $0x14] sm:$0xf]
    %v340 = vld [vmem:[#allocation10 + $0x18] sm:$0xff]
    %v341 = vld [vmem:[#allocation10 + $0x20] sm:$0xf]
    %v342 = vld [vmem:[#allocation10 + $0x24] sm:$0xff]
    %v343 = vld [vmem:[#allocation10 + $0x2c] sm:$0xf]
    %v344 = vld [vmem:[#allocation10 + $0x30] sm:$0xff]
    %v345 = vld [vmem:[#allocation10 + $0x38] sm:$0xf]
    %v346 = vld [vmem:[#allocation10 + $0x3c] sm:$0xff]
    %v347 = vld [vmem:[#allocation10 + $0x44] sm:$0xf]
    %v348 = vld [vmem:[#allocation10 + $0x48] sm:$0xff]
    %v349 = vld [vmem:[#allocation10 + $0x50] sm:$0xf]
    %v350 = vld [vmem:[#allocation10 + $0x54] sm:$0xff]
    %v351 = vld [vmem:[#allocation10 + $0x5c] sm:$0xf]
    %v352 = vld [vmem:[#allocation10 + $0x60] sm:$0xff]
    %v353 = vld [vmem:[#allocation10 + $0x68] sm:$0xf]
    %v354 = vld [vmem:[#allocation10 + $0x6c] sm:$0xff]
    %v355 = vld [vmem:[#allocation10 + $0x74] sm:$0xf]
    %v356 = vld [vmem:[#allocation10 + $0x78] sm:$0xff]
    %v357 = vld [vmem:[#allocation10 + $0x80] sm:$0xf]
    %v358 = vld [vmem:[#allocation10 + $0x84] sm:$0xff]
    %v359 = vld [vmem:[#allocation10 + $0x8c] sm:$0xf]
    %v360 = vld [vmem:[#allocation10 + $0x90] sm:$0xff]
    %v361 = vld [vmem:[#allocation10 + $0x98] sm:$0xf]
    %v362 = vld [vmem:[#allocation10 + $0x9c] sm:$0xff]
    %v363 = vld [vmem:[#allocation10 + $0xa4] sm:$0xf]
    %v364 = vld [vmem:[#allocation10 + $0xa8] sm:$0xff]
    %v365 = vld [vmem:[#allocation10 + $0xb0] sm:$0xf]
    %v366 = vld [vmem:[#allocation10 + $0xb4] sm:$0xff]
    %v367 = vld [vmem:[#allocation10 + $0xbc] sm:$0xf]
    %v368 = vld [vmem:[%s7] sm:$0x7]
    %v370 = vlaneseq
    %v371 = vshrl.u32 %v370, 7
    %v372 = vsub.s32 0, %v371
    %v373 = vrot.slane %v368, %v372
    %v374 = vlaneseq
    %v375 = vshrl.u32 %v374, 7
    %v376 = vsub.s32 1, %v375
    %v377 = vrot.slane %v368, %v376
    %v378 = vlaneseq
    %v379 = vshrl.u32 %v378, 7
    %v380 = vsub.s32 2, %v379
    %v381 = vrot.slane %v368, %v380
    %v417 = vunpack.c.l.b16 %v336
    %v418 = vunpack.c.h.b16 %v336
    %v419 = vunpack.c.l.b16 %v337
    %v420 = vunpack.c.l.b16 %v338
    %v421 = vunpack.c.h.b16 %v338
    %v422 = vunpack.c.l.b16 %v339
    %v423 = vunpack.c.l.b16 %v340
    %v424 = vunpack.c.h.b16 %v340
    %v425 = vunpack.c.l.b16 %v341
    %v426 = vunpack.c.l.b16 %v342
    %v427 = vunpack.c.h.b16 %v342
    %v428 = vunpack.c.l.b16 %v343
    %v429 = vunpack.c.l.b16 %v344
    %v430 = vunpack.c.h.b16 %v344
    %v431 = vunpack.c.l.b16 %v345
    %v432 = vunpack.c.l.b16 %v346
    %v433 = vunpack.c.h.b16 %v346
    %v434 = vunpack.c.l.b16 %v347
    %v435 = vunpack.c.l.b16 %v348
    %v436 = vunpack.c.h.b16 %v348
    %v437 = vunpack.c.l.b16 %v349
    %v438 = vunpack.c.l.b16 %v350
    %v439 = vunpack.c.h.b16 %v350
    %v440 = vunpack.c.l.b16 %v351
    %v441 = vunpack.c.l.b16 %v352
    %v442 = vunpack.c.h.b16 %v352
    %v443 = vunpack.c.l.b16 %v353
    %v444 = vunpack.c.l.b16 %v354
    %v445 = vunpack.c.h.b16 %v354
    %v446 = vunpack.c.l.b16 %v355
    %v447 = vunpack.c.l.b16 %v356
    %v448 = vunpack.c.h.b16 %v356
    %v449 = vunpack.c.l.b16 %v357
    %v450 = vunpack.c.l.b16 %v358
    %v451 = vunpack.c.h.b16 %v358
    %v452 = vunpack.c.l.b16 %v359
    %v453 = vunpack.c.l.b16 %v360
    %v454 = vunpack.c.h.b16 %v360
    %v455 = vunpack.c.l.b16 %v361
    %v456 = vunpack.c.l.b16 %v362
    %v457 = vunpack.c.h.b16 %v362
    %v458 = vunpack.c.l.b16 %v363
    %v459 = vunpack.c.l.b16 %v364
    %v460 = vunpack.c.h.b16 %v364
    %v461 = vunpack.c.l.b16 %v365
    %v462 = vunpack.c.l.b16 %v366
    %v463 = vunpack.c.h.b16 %v366
    %v464 = vunpack.c.l.b16 %v367
    %v465 = vpack.c.b16 %v420, %v417
    %v466 = vpack.c.b16 %v421, %v418
    %v467 = vpack.c.b16 %v422, %v419
    %v468 = vpack.c.b16 %v426, %v423
    %v469 = vpack.c.b16 %v427, %v424
    %v470 = vpack.c.b16 %v428, %v425
    %v471 = vpack.c.b16 %v432, %v429
    %v472 = vpack.c.b16 %v433, %v430
    %v473 = vpack.c.b16 %v434, %v431
    %v474 = vpack.c.b16 %v438, %v435
    %v475 = vpack.c.b16 %v439, %v436
    %v476 = vpack.c.b16 %v440, %v437
    %v477 = vpack.c.b16 %v444, %v441
    %v478 = vpack.c.b16 %v445, %v442
    %v479 = vpack.c.b16 %v446, %v443
    %v480 = vpack.c.b16 %v450, %v447
    %v481 = vpack.c.b16 %v451, %v448
    %v482 = vpack.c.b16 %v452, %v449
    %v483 = vpack.c.b16 %v456, %v453
    %v484 = vpack.c.b16 %v457, %v454
    %v485 = vpack.c.b16 %v458, %v455
    %v486 = vpack.c.b16 %v462, %v459
    %v487 = vpack.c.b16 %v463, %v460
    %v488 = vpack.c.b16 %v464, %v461
    %513 = vmatprep.subr.bf16.mxu0 %v466
    %514 = vmatpush1.bf16.msra.mxu0 %v465
    %515 = vmatprep.subr.bf16.mxu0 %v469
    %516 = vmatpush1.bf16.msra.mxu0 %v468
    %517 = vmatprep.subr.bf16.mxu0 %v472
    %518 = vmatpush1.bf16.msra.mxu0 %v471
    %519 = vmatprep.subr.bf16.mxu0 %v475
    %520 = vmatpush1.bf16.msra.mxu0 %v474
    %521 = vmatprep.subr.bf16.mxu0 %v478
    %522 = vmatpush1.bf16.msra.mxu0 %v477
    %523 = vmatprep.subr.bf16.mxu0 %v481
    %524 = vmatpush1.bf16.msra.mxu0 %v480
    %525 = vmatprep.subr.bf16.mxu0 %v484
    %526 = vmatpush1.bf16.msra.mxu0 %v483
    %527 = vmatprep.subr.bf16.mxu0 %v487
    %528 = vmatpush1.bf16.msra.mxu0 %v486
    %529 = vmatprep.subr.bf16.mxu0 0
    %530 = vmatpush1.bf16.msra.mxu0 0
    %531 = vmatprep.subr.bf16.mxu0 0
    %532 = vmatpush1.bf16.msra.mxu0 0
    %533 = vmatprep.subr.bf16.mxu0 0
    %534 = vmatpush1.bf16.msra.mxu0 0
    %535 = vmatprep.subr.bf16.mxu0 0
    %536 = vmatpush1.bf16.msra.mxu0 0
    %537 = vmatprep.subr.bf16.mxu0 0
    %538 = vmatpush1.bf16.msra.mxu0 0
    %539 = vmatprep.subr.bf16.mxu0 0
    %540 = vmatpush1.bf16.msra.mxu0 0
    %541 = vmatprep.subr.bf16.mxu0 0
    %542 = vmatpush1.bf16.msra.mxu0 0
    %543 = vmatprep.subr.bf16.mxu0 0
    %544 = vmatpush1.bf16.msra.mxu0 0
    %545 = vmatprep.mubr.bf16.mxu0 0
    %546 = vmatmul.mubr.bf16.gmra.mrb[0].mxu0 %v214
    %v547 = vpop.f32.mrb[0].mxu0
    %v548 = vadd.f32 %v373, %v547
    %v549 = vpop.f32.mrb[0].mxu0
    %v550 = vadd.f32 %v377, %v549
    %v551 = vpop.f32.mrb[0].mxu0
    %v552 = vadd.f32 %v373, %v551
    %v553 = vpop.f32.mrb[0].mxu0
    %v554 = vadd.f32 %v377, %v553
    %555 = vdwg.mxu0
    %556 = vmatprep.subr.bf16.mxu0 0
    %557 = vmatpush1.bf16.msra.mxu0 %v467
    %558 = vmatprep.subr.bf16.mxu0 0
    %559 = vmatpush1.bf16.msra.mxu0 %v470
    %560 = vmatprep.subr.bf16.mxu0 0
    %561 = vmatpush1.bf16.msra.mxu0 %v473
    %562 = vmatprep.subr.bf16.mxu0 0
    %563 = vmatpush1.bf16.msra.mxu0 %v476
    %564 = vmatprep.subr.bf16.mxu0 0
    %565 = vmatpush1.bf16.msra.mxu0 %v479
    %566 = vmatprep.subr.bf16.mxu0 0
    %567 = vmatpush1.bf16.msra.mxu0 %v482
    %568 = vmatprep.subr.bf16.mxu0 0
    %569 = vmatpush1.bf16.msra.mxu0 %v485
    %570 = vmatprep.subr.bf16.mxu0 0
    %571 = vmatpush1.bf16.msra.mxu0 %v488
    %572 = vmatprep.subr.bf16.mxu0 0
    %573 = vmatpush1.bf16.msra.mxu0 0
    %574 = vmatprep.subr.bf16.mxu0 0
    %575 = vmatpush1.bf16.msra.mxu0 0
    %576 = vmatprep.subr.bf16.mxu0 0
    %577 = vmatpush1.bf16.msra.mxu0 0
    %578 = vmatprep.subr.bf16.mxu0 0
    %579 = vmatpush1.bf16.msra.mxu0 0
    %580 = vmatprep.subr.bf16.mxu0 0
    %581 = vmatpush1.bf16.msra.mxu0 0
    %582 = vmatprep.subr.bf16.mxu0 0
    %583 = vmatpush1.bf16.msra.mxu0 0
    %584 = vmatprep.subr.bf16.mxu0 0
    %585 = vmatpush1.bf16.msra.mxu0 0
    %586 = vmatprep.subr.bf16.mxu0 0
    %587 = vmatpush1.bf16.msra.mxu0 0
    %588 = vmatprep.mubr.bf16.mxu0 0
    %589 = vmatmul.mubr.bf16.gmra.mrb[0].mxu0 %v214
    %v590 = vpop.f32.mrb[0].mxu0
    %v591 = vadd.f32 %v381, %v590
    %v592 = vpop.f32.mrb[0].mxu0
    %v593 = vpop.f32.mrb[0].mxu0
    %v594 = vadd.f32 %v381, %v593
    %v595 = vpop.f32.mrb[0].mxu0
    %596 = vdwg.mxu0
    %v597 = vadd.f32 %v287, %v548
    %v598 = vadd.f32 %v291, %v552
    %v599 = vxor.u32 %v597, 2147483648
    %v600 = vxor.u32 %v598, 2147483648
    %v601 = vmul.f32 %v599, 1.442695
    %v602 = vpow.pop %v601
    %v603 = vmul.f32 %v600, 1.442695
    %v604 = vpow.pop %v603
    %v605 = vadd.f32 %v602, 1.0
    %v606 = vadd.f32 %v604, 1.0
    %v607 = vrcp.pop %v605
    %v608 = vmul.f32 1.0, %v607
    %v609 = vrcp.pop %v606
    %v610 = vmul.f32 1.0, %v609
    %v611 = vadd.f32 %v289, %v550
    %v612 = vadd.f32 %v293, %v554
    %v613 = vxor.u32 %v611, 2147483648
    %v614 = vxor.u32 %v612, 2147483648
    %v615 = vmul.f32 %v613, 1.442695
    %v616 = vpow.pop %v615
    %v617 = vmul.f32 %v614, 1.442695
    %v618 = vpow.pop %v617
    %v619 = vadd.f32 %v616, 1.0
    %v620 = vadd.f32 %v618, 1.0
    %v621 = vrcp.pop %v619
    %v622 = vmul.f32 1.0, %v621
    %v623 = vrcp.pop %v620
    %v624 = vmul.f32 1.0, %v623
    %v625 = vmul.f32 %v608, %v591
    %v626 = vmul.f32 %v610, %v594
    %v627 = vadd.f32 %v330, %v625
    %v628 = vadd.f32 %v333, %v626
    %v629 = vtanh.pop %v627
    %v630 = vtanh.pop %v628
    %v631 = vmul.f32 %v622, %v629
    %v632 = vmul.f32 %v624, %v630
    %v633 = vsub.f32 1.0, %v622
    %v634 = vsub.f32 1.0, %v624
    %v635 = vmul.f32 %v633, %v156
    %v636 = vmul.f32 %v634, %v159
    %v637 = vadd.f32 %v631, %v635
    %v638 = vadd.f32 %v632, %v636
    %639 = vst [vmem:[#allocation11] sm:$0xff] %v637
    %640 = vst [vmem:[#allocation11 + $0x8] sm:$0xff] %v638
    // Predicated region
    $region54: #{tpu_custom_call.1} parent=1 // pred_check
      _
    $region55: #{tpu_custom_call.1} parent=1 // pred_check_branch
      %642 = sbr.rel (0) target = $region57
    $region56: #{tpu_custom_call.1} parent=1 // pred_region
      %s644 = ssub.s32 256, 256
      %645 = vsyncadd [#allocation4], %s644
      %s646 = sshll.u32 [#allocation11], 4
      %s647 = int_to_ptr.vmem [resolvable:$true] %s646
      %652 = dma.vmem_to_hbm [thread:$0]  %s647, 256, %s8, [#allocation4], 128, 128, 8
    $region57: #{tpu_custom_call.1} parent=1 // pred_fallthru
      _
    // Predicated region
    $region58: #{tpu_custom_call.1} parent=1 // pred_check
      _
    $region59: #{tpu_custom_call.1} parent=1 // pred_check_branch
      %654 = sbr.rel (0) target = $region61
    $region60: #{tpu_custom_call.1} parent=1 // pred_region
      %655 = dma.done [#allocation4], 256
    $region61: #{tpu_custom_call.1} parent=1 // pred_fallthru
      _
    %656 = vsyncpa [#allocation3], 1
    %657 = vsyncpa [#allocation6], 1
    %658 = vsyncpa [#allocation9], 1
    %659 = vsyncpa [#allocation4], 1

// kernel: tpu_custom_call.1
$region0: #{tpu_custom_call.1}
  #allocation0 [shape = 'u32[]', space=smem, size = 0x4, offset = 0x4, fixed_abs, tag = 'smem constant byte address 0x4 - core index']
  #allocation1 [shape = 'u32[144,128]{1,0:T(1,128)}', space=vmem, size = 0x12000, scoped, tag = 'internal scratch']
  %s0 = inlined_call_operand.hbm [shape: bf16[16,16], index: 0, kind: input, shape index: {}]
  %s1 = inlined_call_operand.hbm [shape: f32[16,16], index: 1, kind: input, shape index: {}]
  %s2 = inlined_call_operand.hbm [shape: bf16[16,128], index: 2, kind: input, shape index: {}]
  %s3 = inlined_call_operand.vmem [shape: f32[1,128], index: 3, kind: input, shape index: {}]
  %s4 = inlined_call_operand.hbm [shape: bf16[16,384], index: 4, kind: input, shape index: {}]
  %s5 = inlined_call_operand.vmem [shape: f32[1,384], index: 5, kind: input, shape index: {}]
  %s6 = inlined_call_operand.hbm [shape: bf16[128,384], index: 6, kind: input, shape index: {}]
  %s7 = inlined_call_operand.vmem [shape: f32[1,384], index: 7, kind: input, shape index: {}]
  %s8 = inlined_call_operand.hbm [shape: f32[16,128], index: 8, kind: output, shape index: {}]
  %s9 = sld [smem:[#allocation0]]
  $region62: #{tpu_custom_call.1} parent=0
    _
  %s11 = ssub.s32 1, %s9
  %s12 = scalar_select 0, %s11, %s9
  $region1: #{tpu_custom_call.1} parent=0
    #allocation2 [shape = 'u8[4096]{0}', space=vmem, size = 0x1000, scoped, tag = 'input window, operand 0, single buffered']
    #allocation3 [shape = 's32[1]{0}', space=sflag, size = 0x4, scoped, tag = 'scoped memory for tpu_custom_call.1']
    #allocation4 [shape = 's32[1]{0}', space=sflag, size = 0x4, scoped, tag = 'scoped memory for tpu_custom_call.1']
    #allocation5 [shape = 'u8[8192]{0}', space=vmem, size = 0x2000, scoped, tag = 'input window, operand 1, single buffered']
    #allocation6 [shape = 's32[1]{0}', space=sflag, size = 0x4, scoped, tag = 'scoped memory for tpu_custom_call.1']
    #allocation7 [shape = 'u8[4096]{0}', space=vmem, size = 0x1000, scoped, tag = 'input window, operand 2, single buffered']
    #allocation8 [shape = 'u8[12288]{0}', space=vmem, size = 0x3000, scoped, tag = 'input window, operand 4, single buffered']
    #allocation9 [shape = 's32[1]{0}', space=sflag, size = 0x4, scoped, tag = 'scoped memory for tpu_custom_call.1']
    #allocation10 [shape = 'u8[98304]{0}', space=vmem, size = 0x18000, scoped, tag = 'input window, operand 6, single buffered']
    #allocation11 [shape = 'u8[8192]{0}', space=vmem, size = 0x2000, scoped, tag = 'output window, operand 0, single buffered']
    %13 = vsyncpa [#allocation3], 0
    %14 = vsyncpa [#allocation6], 0
    %15 = vsyncpa [#allocation9], 0
    %16 = vsyncpa [#allocation4], 0
    // Predicated region
    $region2: #{tpu_custom_call.1} parent=1 // pred_check
      _
    $region3: #{tpu_custom_call.1} parent=1 // pred_check_branch
      %18 = sbr.rel (0) target = $region5
    $region4: #{tpu_custom_call.1} parent=1 // pred_region
      %s20 = ssub.s32 128, 128
      %21 = vsyncadd [#allocation3], %s20
      %s22 = sshll.u32 [#allocation2], 4
      %s23 = int_to_ptr.vmem [resolvable:$true] %s22
      %28 = dma.hbm_to_vmem [thread:$0]  %s0, 128, %s23, [#allocation3], 64, 64, 4
    $region5: #{tpu_custom_call.1} parent=1 // pred_fallthru
      _
    // Predicated region
    $region6: #{tpu_custom_call.1} parent=1 // pred_check
      _
    $region7: #{tpu_custom_call.1} parent=1 // pred_check_branch
      %30 = sbr.rel (0) target = $region9
    $region8: #{tpu_custom_call.1} parent=1 // pred_region
      %s32 = ssub.s32 256, 256
      %33 = vsyncadd [#allocation6], %s32
      %s34 = sshll.u32 [#allocation5], 4
      %s35 = int_to_ptr.vmem [resolvable:$true] %s34
      %40 = dma.hbm_to_vmem [thread:$0]  %s1, 256, %s35, [#allocation6], 128, 128, 8
    $region9: #{tpu_custom_call.1} parent=1 // pred_fallthru
      _
    // Predicated region
    $region10: #{tpu_custom_call.1} parent=1 // pred_check
      _
    $region11: #{tpu_custom_call.1} parent=1 // pred_check_branch
      %42 = sbr.rel (0) target = $region13
    $region12: #{tpu_custom_call.1} parent=1 // pred_region
      %s44 = ssub.s32 128, 128
      %45 = vsyncadd [#allocation6], %s44
      %s46 = sshll.u32 [#allocation7], 4
      %s47 = int_to_ptr.vmem [resolvable:$true] %s46
      %52 = dma.hbm_to_vmem [thread:$0]  %s2, 128, %s47, [#allocation6], 64, 64, 4
    $region13: #{tpu_custom_call.1} parent=1 // pred_fallthru
      _
    // Predicated region
    $region14: #{tpu_custom_call.1} parent=1 // pred_check
      _
    $region15: #{tpu_custom_call.1} parent=1 // pred_check_branch
      %54 = sbr.rel (0) target = $region17
    $region16: #{tpu_custom_call.1} parent=1 // pred_region
      _
    $region17: #{tpu_custom_call.1} parent=1 // pred_fallthru
      _
    // Predicated region
    $region18: #{tpu_custom_call.1} parent=1 // pred_check
      _
    $region19: #{tpu_custom_call.1} parent=1 // pred_check_branch
      %56 = sbr.rel (0) target = $region21
    $region20: #{tpu_custom_call.1} parent=1 // pred_region
      %s58 = ssub.s32 384, 384
      %59 = vsyncadd [#allocation9], %s58
      %s60 = sshll.u32 [#allocation8], 4
      %s61 = int_to_ptr.vmem [resolvable:$true] %s60
      %66 = dma.hbm_to_vmem [thread:$0]  %s4, 384, %s61, [#allocation9], 192, 192, 12
    $region21: #{tpu_custom_call.1} parent=1 // pred_fallthru
      _
    // Predicated region
    $region22: #{tpu_custom_call.1} parent=1 // pred_check
      _
    $region23: #{tpu_custom_call.1} parent=1 // pred_check_branch
      %68 = sbr.rel (0) target = $region25
    $region24: #{tpu_custom_call.1} parent=1 // pred_region
      _
    $region25: #{tpu_custom_call.1} parent=1 // pred_fallthru
      _
    // Predicated region
    $region26: #{tpu_custom_call.1} parent=1 // pred_check
      _
    $region27: #{tpu_custom_call.1} parent=1 // pred_check_branch
      %70 = sbr.rel (0) target = $region29
    $region28: #{tpu_custom_call.1} parent=1 // pred_region
      %s72 = ssub.s32 3072, 3072
      %73 = vsyncadd [#allocation9], %s72
      %s74 = sshll.u32 [#allocation10], 4
      %s75 = int_to_ptr.vmem [resolvable:$true] %s74
      %80 = dma.hbm_to_vmem [thread:$0]  %s6, 3072, %s75, [#allocation9], 192, 192, 12
    $region29: #{tpu_custom_call.1} parent=1 // pred_fallthru
      _
    // Predicated region
    $region30: #{tpu_custom_call.1} parent=1 // pred_check
      _
    $region31: #{tpu_custom_call.1} parent=1 // pred_check_branch
      %82 = sbr.rel (0) target = $region33
    $region32: #{tpu_custom_call.1} parent=1 // pred_region
      _
    $region33: #{tpu_custom_call.1} parent=1 // pred_fallthru
      _
    // Predicated region
    $region34: #{tpu_custom_call.1} parent=1 // pred_check
      _
    $region35: #{tpu_custom_call.1} parent=1 // pred_check_branch
      %84 = sbr.rel (0) target = $region37
    $region36: #{tpu_custom_call.1} parent=1 // pred_region
      %85 = dma.done [#allocation3], 128
    $region37: #{tpu_custom_call.1} parent=1 // pred_fallthru
      _
    // Predicated region
    $region38: #{tpu_custom_call.1} parent=1 // pred_check
      _
    $region39: #{tpu_custom_call.1} parent=1 // pred_check_branch
      %87 = sbr.rel (0) target = $region41
    $region40: #{tpu_custom_call.1} parent=1 // pred_region
      %88 = dma.done [#allocation6], 256
    $region41: #{tpu_custom_call.1} parent=1 // pred_fallthru
      _
    // Predicated region
    $region42: #{tpu_custom_call.1} parent=1 // pred_check
      _
    $region43: #{tpu_custom_call.1} parent=1 // pred_check_branch
      %90 = sbr.rel (0) target = $region45
    $region44: #{tpu_custom_call.1} parent=1 // pred_region
      %91 = dma.done [#allocation6], 128
    $region45: #{tpu_custom_call.1} parent=1 // pred_fallthru
      _
    // Predicated region
    $region46: #{tpu_custom_call.1} parent=1 // pred_check
      _
    $region47: #{tpu_custom_call.1} parent=1 // pred_check_branch
      %93 = sbr.rel (0) target = $region49
    $region48: #{tpu_custom_call.1} parent=1 // pred_region
      %94 = dma.done [#allocation9], 384
    $region49: #{tpu_custom_call.1} parent=1 // pred_fallthru
      _
    // Predicated region
    $region50: #{tpu_custom_call.1} parent=1 // pred_check
      _
    $region51: #{tpu_custom_call.1} parent=1 // pred_check_branch
      %96 = sbr.rel (0) target = $region53
    $region52: #{tpu_custom_call.1} parent=1 // pred_region
      %97 = dma.done [#allocation9], 3072
    $region53: #{tpu_custom_call.1} parent=1 // pred_fallthru
      _
    %v99 = vld [vmem:[#allocation5] sm:$0xff]
    %v100 = vld [vmem:[#allocation5 + $0x8] sm:$0xff]
    %v101 = vpack.c.bf16 %v100, %v99
    %v102 = vld [vmem:[#allocation7] sm:$0xf]
    %v103 = vld [vmem:[#allocation7 + $0x4] sm:$0xf]
    %v104 = vld [vmem:[%s3] sm:$0x1]
    %v106 = vlaneseq
    %v107 = vshrl.u32 %v106, 7
    %v108 = vsub.s32 0, %v107
    %v109 = vrot.slane %v104, %v108
    %v113 = vunpack.c.l.b16 %v102
    %v114 = vunpack.c.l.b16 %v103
    %v115 = vpack.c.b16 %v114, %v113
    %vm117 = vcmask 130048
    %v119 = vsel %vm117, %v101, 0
    %121 = vmatprep.subr.bf16.mxu0 0
    %122 = vmatpush1.bf16.msra.mxu0 %v115
    %123 = vmatprep.subr.bf16.mxu0 0
    %124 = vmatpush1.bf16.msra.mxu0 0
    %125 = vmatprep.subr.bf16.mxu0 0
    %126 = vmatpush1.bf16.msra.mxu0 0
    %127 = vmatprep.subr.bf16.mxu0 0
    %128 = vmatpush1.bf16.msra.mxu0 0
    %129 = vmatprep.subr.bf16.mxu0 0
    %130 = vmatpush1.bf16.msra.mxu0 0
    %131 = vmatprep.subr.bf16.mxu0 0
    %132 = vmatpush1.bf16.msra.mxu0 0
    %133 = vmatprep.subr.bf16.mxu0 0
    %134 = vmatpush1.bf16.msra.mxu0 0
    %135 = vmatprep.subr.bf16.mxu0 0
    %136 = vmatpush1.bf16.msra.mxu0 0
    %137 = vmatprep.subr.bf16.mxu0 0
    %138 = vmatpush1.bf16.msra.mxu0 0
    %139 = vmatprep.subr.bf16.mxu0 0
    %140 = vmatpush1.bf16.msra.mxu0 0
    %141 = vmatprep.subr.bf16.mxu0 0
    %142 = vmatpush1.bf16.msra.mxu0 0
    %143 = vmatprep.subr.bf16.mxu0 0
    %144 = vmatpush1.bf16.msra.mxu0 0
    %145 = vmatprep.subr.bf16.mxu0 0
    %146 = vmatpush1.bf16.msra.mxu0 0
    %147 = vmatprep.subr.bf16.mxu0 0
    %148 = vmatpush1.bf16.msra.mxu0 0
    %149 = vmatprep.subr.bf16.mxu0 0
    %150 = vmatpush1.bf16.msra.mxu0 0
    %151 = vmatprep.subr.bf16.mxu0 0
    %152 = vmatpush1.bf16.msra.mxu0 0
    %153 = vmatprep.mubr.bf16.mxu0 0
    %154 = vmatmul.mubr.bf16.gmra.mrb[0].mxu0 %v119
    %v155 = vpop.f32.mrb[0].mxu0
    %v156 = vadd.f32 %v109, %v155
    %v157 = vpop.f32.mrb[0].mxu0
    %v158 = vpop.f32.mrb[0].mxu0
    %v159 = vadd.f32 %v109, %v158
    %v160 = vpop.f32.mrb[0].mxu0
    %161 = vdwg.mxu0
    %v162 = vpack.c.bf16 %v159, %v156
    %v163 = vld [vmem:[#allocation2] sm:$0xf]
    %v164 = vld [vmem:[#allocation2 + $0x4] sm:$0xf]
    %v167 = vunpack.c.l.b16 %v163
    %v168 = vunpack.c.l.b16 %v164
    %v169 = vpack.c.b16 %v168, %v167
    %v171 = vsel %vm117, %v169, 0
    %173 = vmatprep.subr.bf16.mxu0 0
    %174 = vmatpush1.bf16.msra.mxu0 %v162
    %175 = vmatprep.subr.bf16.mxu0 0
    %176 = vmatpush1.bf16.msra.mxu0 0
    %177 = vmatprep.subr.bf16.mxu0 0
    %178 = vmatpush1.bf16.msra.mxu0 0
    %179 = vmatprep.subr.bf16.mxu0 0
    %180 = vmatpush1.bf16.msra.mxu0 0
    %181 = vmatprep.subr.bf16.mxu0 0
    %182 = vmatpush1.bf16.msra.mxu0 0
    %183 = vmatprep.subr.bf16.mxu0 0
    %184 = vmatpush1.bf16.msra.mxu0 0
    %185 = vmatprep.subr.bf16.mxu0 0
    %186 = vmatpush1.bf16.msra.mxu0 0
    %187 = vmatprep.subr.bf16.mxu0 0
    %188 = vmatpush1.bf16.msra.mxu0 0
    %189 = vmatprep.subr.bf16.mxu0 0
    %190 = vmatpush1.bf16.msra.mxu0 0
    %191 = vmatprep.subr.bf16.mxu0 0
    %192 = vmatpush1.bf16.msra.mxu0 0
    %193 = vmatprep.subr.bf16.mxu0 0
    %194 = vmatpush1.bf16.msra.mxu0 0
    %195 = vmatprep.subr.bf16.mxu0 0
    %196 = vmatpush1.bf16.msra.mxu0 0
    %197 = vmatprep.subr.bf16.mxu0 0
    %198 = vmatpush1.bf16.msra.mxu0 0
    %199 = vmatprep.subr.bf16.mxu0 0
    %200 = vmatpush1.bf16.msra.mxu0 0
    %201 = vmatprep.subr.bf16.mxu0 0
    %202 = vmatpush1.bf16.msra.mxu0 0
    %203 = vmatprep.subr.bf16.mxu0 0
    %204 = vmatpush1.bf16.msra.mxu0 0
    %205 = vmatprep.mubr.bf16.mxu0 0
    %206 = vmatmul.mubr.bf16.gmra.mrb[0].mxu0 %v171
    %v207 = vpop.f32.mrb[0].mxu0
    %v208 = vadd.f32 0.0, %v207
    %v209 = vpop.f32.mrb[0].mxu0
    %v210 = vpop.f32.mrb[0].mxu0
    %v211 = vadd.f32 0.0, %v210
    %v212 = vpop.f32.mrb[0].mxu0
    %213 = vdwg.mxu0
    %v214 = vpack.c.bf16 %v211, %v208
    %v215 = vld [vmem:[#allocation8] sm:$0xff]
    %v216 = vld [vmem:[#allocation8 + $0x8] sm:$0xf]
    %v217 = vld [vmem:[#allocation8 + $0xc] sm:$0xff]
    %v218 = vld [vmem:[#allocation8 + $0x14] sm:$0xf]
    %v219 = vld [vmem:[%s5] sm:$0x7]
    %v221 = vlaneseq
    %v222 = vshrl.u32 %v221, 7
    %v223 = vsub.s32 0, %v222
    %v224 = vrot.slane %v219, %v223
    %v225 = vlaneseq
    %v226 = vshrl.u32 %v225, 7
    %v227 = vsub.s32 1, %v226
    %v228 = vrot.slane %v219, %v227
    %v229 = vlaneseq
    %v230 = vshrl.u32 %v229, 7
    %v231 = vsub.s32 2, %v230
    %v232 = vrot.slane %v219, %v231
    %v240 = vunpack.c.l.b16 %v215
    %v241 = vunpack.c.h.b16 %v215
    %v242 = vunpack.c.l.b16 %v216
    %v243 = vunpack.c.l.b16 %v217
    %v244 = vunpack.c.h.b16 %v217
    %v245 = vunpack.c.l.b16 %v218
    %v246 = vpack.c.b16 %v243, %v240
    %v247 = vpack.c.b16 %v244, %v241
    %v248 = vpack.c.b16 %v245, %v242
    %252 = vmatprep.subr.bf16.mxu0 %v247
    %253 = vmatpush1.bf16.msra.mxu0 %v246
    %254 = vmatprep.subr.bf16.mxu0 0
    %255 = vmatpush1.bf16.msra.mxu0 0
    %256 = vmatprep.subr.bf16.mxu0 0
    %257 = vmatpush1.bf16.msra.mxu0 0
    %258 = vmatprep.subr.bf16.mxu0 0
    %259 = vmatpush1.bf16.msra.mxu0 0
    %260 = vmatprep.subr.bf16.mxu0 0
    %261 = vmatpush1.bf16.msra.mxu0 0
    %262 = vmatprep.subr.bf16.mxu0 0
    %263 = vmatpush1.bf16.msra.mxu0 0
    %264 = vmatprep.subr.bf16.mxu0 0
    %265 = vmatpush1.bf16.msra.mxu0 0
    %266 = vmatprep.subr.bf16.mxu0 0
    %267 = vmatpush1.bf16.msra.mxu0 0
    %268 = vmatprep.subr.bf16.mxu0 0
    %269 = vmatpush1.bf16.msra.mxu0 0
    %270 = vmatprep.subr.bf16.mxu0 0
    %271 = vmatpush1.bf16.msra.mxu0 0
    %272 = vmatprep.subr.bf16.mxu0 0
    %273 = vmatpush1.bf16.msra.mxu0 0
    %274 = vmatprep.subr.bf16.mxu0 0
    %275 = vmatpush1.bf16.msra.mxu0 0
    %276 = vmatprep.subr.bf16.mxu0 0
    %277 = vmatpush1.bf16.msra.mxu0 0
    %278 = vmatprep.subr.bf16.mxu0 0
    %279 = vmatpush1.bf16.msra.mxu0 0
    %280 = vmatprep.subr.bf16.mxu0 0
    %281 = vmatpush1.bf16.msra.mxu0 0
    %282 = vmatprep.subr.bf16.mxu0 0
    %283 = vmatpush1.bf16.msra.mxu0 0
    %284 = vmatprep.mubr.bf16.mxu0 0
    %285 = vmatmul.mubr.bf16.gmra.mrb[0].mxu0 %v119
    %v286 = vpop.f32.mrb[0].mxu0
    %v287 = vadd.f32 %v224, %v286
    %v288 = vpop.f32.mrb[0].mxu0
    %v289 = vadd.f32 %v228, %v288
    %v290 = vpop.f32.mrb[0].mxu0
    %v291 = vadd.f32 %v224, %v290
    %v292 = vpop.f32.mrb[0].mxu0
    %v293 = vadd.f32 %v228, %v292
    %294 = vdwg.mxu0
    %295 = vmatprep.subr.bf16.mxu0 0
    %296 = vmatpush1.bf16.msra.mxu0 %v248
    %297 = vmatprep.subr.bf16.mxu0 0
    %298 = vmatpush1.bf16.msra.mxu0 0
    %299 = vmatprep.subr.bf16.mxu0 0
    %300 = vmatpush1.bf16.msra.mxu0 0
    %301 = vmatprep.subr.bf16.mxu0 0
    %302 = vmatpush1.bf16.msra.mxu0 0
    %303 = vmatprep.subr.bf16.mxu0 0
    %304 = vmatpush1.bf16.msra.mxu0 0
    %305 = vmatprep.subr.bf16.mxu0 0
    %306 = vmatpush1.bf16.msra.mxu0 0
    %307 = vmatprep.subr.bf16.mxu0 0
    %308 = vmatpush1.bf16.msra.mxu0 0
    %309 = vmatprep.subr.bf16.mxu0 0
    %310 = vmatpush1.bf16.msra.mxu0 0
    %311 = vmatprep.subr.bf16.mxu0 0
    %312 = vmatpush1.bf16.msra.mxu0 0
    %313 = vmatprep.subr.bf16.mxu0 0
    %314 = vmatpush1.bf16.msra.mxu0 0
    %315 = vmatprep.subr.bf16.mxu0 0
    %316 = vmatpush1.bf16.msra.mxu0 0
    %317 = vmatprep.subr.bf16.mxu0 0
    %318 = vmatpush1.bf16.msra.mxu0 0
    %319 = vmatprep.subr.bf16.mxu0 0
    %320 = vmatpush1.bf16.msra.mxu0 0
    %321 = vmatprep.subr.bf16.mxu0 0
    %322 = vmatpush1.bf16.msra.mxu0 0
    %323 = vmatprep.subr.bf16.mxu0 0
    %324 = vmatpush1.bf16.msra.mxu0 0
    %325 = vmatprep.subr.bf16.mxu0 0
    %326 = vmatpush1.bf16.msra.mxu0 0
    %327 = vmatprep.mubr.bf16.mxu0 0
    %328 = vmatmul.mubr.bf16.gmra.mrb[0].mxu0 %v119
    %v329 = vpop.f32.mrb[0].mxu0
    %v330 = vadd.f32 %v232, %v329
    %v331 = vpop.f32.mrb[0].mxu0
    %v332 = vpop.f32.mrb[0].mxu0
    %v333 = vadd.f32 %v232, %v332
    %v334 = vpop.f32.mrb[0].mxu0
    %335 = vdwg.mxu0
    %v336 = vld [vmem:[#allocation10] sm:$0xff]
    %v337 = vld [vmem:[#allocation10 + $0x8] sm:$0xf]
    %v338 = vld [vmem:[#allocation10 + $0xc] sm:$0xff]
    %v339 = vld [vmem:[#allocation10 + $0x14] sm:$0xf]
    %v340 = vld [vmem:[#allocation10 + $0x18] sm:$0xff]
    %v341 = vld [vmem:[#allocation10 + $0x20] sm:$0xf]
    %v342 = vld [vmem:[#allocation10 + $0x24] sm:$0xff]
    %v343 = vld [vmem:[#allocation10 + $0x2c] sm:$0xf]
    %v344 = vld [vmem:[#allocation10 + $0x30] sm:$0xff]
    %v345 = vld [vmem:[#allocation10 + $0x38] sm:$0xf]
    %v346 = vld [vmem:[#allocation10 + $0x3c] sm:$0xff]
    %v347 = vld [vmem:[#allocation10 + $0x44] sm:$0xf]
    %v348 = vld [vmem:[#allocation10 + $0x48] sm:$0xff]
    %v349 = vld [vmem:[#allocation10 + $0x50] sm:$0xf]
    %v350 = vld [vmem:[#allocation10 + $0x54] sm:$0xff]
    %v351 = vld [vmem:[#allocation10 + $0x5c] sm:$0xf]
    %v352 = vld [vmem:[#allocation10 + $0x60] sm:$0xff]
    %v353 = vld [vmem:[#allocation10 + $0x68] sm:$0xf]
    %v354 = vld [vmem:[#allocation10 + $0x6c] sm:$0xff]
    %v355 = vld [vmem:[#allocation10 + $0x74] sm:$0xf]
    %v356 = vld [vmem:[#allocation10 + $0x78] sm:$0xff]
    %v357 = vld [vmem:[#allocation10 + $0x80] sm:$0xf]
    %v358 = vld [vmem:[#allocation10 + $0x84] sm:$0xff]
    %v359 = vld [vmem:[#allocation10 + $0x8c] sm:$0xf]
    %v360 = vld [vmem:[#allocation10 + $0x90] sm:$0xff]
    %v361 = vld [vmem:[#allocation10 + $0x98] sm:$0xf]
    %v362 = vld [vmem:[#allocation10 + $0x9c] sm:$0xff]
    %v363 = vld [vmem:[#allocation10 + $0xa4] sm:$0xf]
    %v364 = vld [vmem:[#allocation10 + $0xa8] sm:$0xff]
    %v365 = vld [vmem:[#allocation10 + $0xb0] sm:$0xf]
    %v366 = vld [vmem:[#allocation10 + $0xb4] sm:$0xff]
    %v367 = vld [vmem:[#allocation10 + $0xbc] sm:$0xf]
    %v368 = vld [vmem:[%s7] sm:$0x7]
    %v370 = vlaneseq
    %v371 = vshrl.u32 %v370, 7
    %v372 = vsub.s32 0, %v371
    %v373 = vrot.slane %v368, %v372
    %v374 = vlaneseq
    %v375 = vshrl.u32 %v374, 7
    %v376 = vsub.s32 1, %v375
    %v377 = vrot.slane %v368, %v376
    %v378 = vlaneseq
    %v379 = vshrl.u32 %v378, 7
    %v380 = vsub.s32 2, %v379
    %v381 = vrot.slane %v368, %v380
    %v417 = vunpack.c.l.b16 %v336
    %v418 = vunpack.c.h.b16 %v336
    %v419 = vunpack.c.l.b16 %v337
    %v420 = vunpack.c.l.b16 %v338
    %v421 = vunpack.c.h.b16 %v338
    %v422 = vunpack.c.l.b16 %v339
    %v423 = vunpack.c.l.b16 %v340
    %v424 = vunpack.c.h.b16 %v340
    %v425 = vunpack.c.l.b16 %v341
    %v426 = vunpack.c.l.b16 %v342
    %v427 = vunpack.c.h.b16 %v342
    %v428 = vunpack.c.l.b16 %v343
    %v429 = vunpack.c.l.b16 %v344
    %v430 = vunpack.c.h.b16 %v344
    %v431 = vunpack.c.l.b16 %v345
    %v432 = vunpack.c.l.b16 %v346
    %v433 = vunpack.c.h.b16 %v346
    %v434 = vunpack.c.l.b16 %v347
    %v435 = vunpack.c.l.b16 %v348
    %v436 = vunpack.c.h.b16 %v348
    %v437 = vunpack.c.l.b16 %v349
    %v438 = vunpack.c.l.b16 %v350
    %v439 = vunpack.c.h.b16 %v350
    %v440 = vunpack.c.l.b16 %v351
    %v441 = vunpack.c.l.b16 %v352
    %v442 = vunpack.c.h.b16 %v352
    %v443 = vunpack.c.l.b16 %v353
    %v444 = vunpack.c.l.b16 %v354
    %v445 = vunpack.c.h.b16 %v354
    %v446 = vunpack.c.l.b16 %v355
    %v447 = vunpack.c.l.b16 %v356
    %v448 = vunpack.c.h.b16 %v356
    %v449 = vunpack.c.l.b16 %v357
    %v450 = vunpack.c.l.b16 %v358
    %v451 = vunpack.c.h.b16 %v358
    %v452 = vunpack.c.l.b16 %v359
    %v453 = vunpack.c.l.b16 %v360
    %v454 = vunpack.c.h.b16 %v360
    %v455 = vunpack.c.l.b16 %v361
    %v456 = vunpack.c.l.b16 %v362
    %v457 = vunpack.c.h.b16 %v362
    %v458 = vunpack.c.l.b16 %v363
    %v459 = vunpack.c.l.b16 %v364
    %v460 = vunpack.c.h.b16 %v364
    %v461 = vunpack.c.l.b16 %v365
    %v462 = vunpack.c.l.b16 %v366
    %v463 = vunpack.c.h.b16 %v366
    %v464 = vunpack.c.l.b16 %v367
    %v465 = vpack.c.b16 %v420, %v417
    %v466 = vpack.c.b16 %v421, %v418
    %v467 = vpack.c.b16 %v422, %v419
    %v468 = vpack.c.b16 %v426, %v423
    %v469 = vpack.c.b16 %v427, %v424
    %v470 = vpack.c.b16 %v428, %v425
    %v471 = vpack.c.b16 %v432, %v429
    %v472 = vpack.c.b16 %v433, %v430
    %v473 = vpack.c.b16 %v434, %v431
    %v474 = vpack.c.b16 %v438, %v435
    %v475 = vpack.c.b16 %v439, %v436
    %v476 = vpack.c.b16 %v440, %v437
    %v477 = vpack.c.b16 %v444, %v441
    %v478 = vpack.c.b16 %v445, %v442
    %v479 = vpack.c.b16 %v446, %v443
    %v480 = vpack.c.b16 %v450, %v447
    %v481 = vpack.c.b16 %v451, %v448
    %v482 = vpack.c.b16 %v452, %v449
    %v483 = vpack.c.b16 %v456, %v453
    %v484 = vpack.c.b16 %v457, %v454
    %v485 = vpack.c.b16 %v458, %v455
    %v486 = vpack.c.b16 %v462, %v459
    %v487 = vpack.c.b16 %v463, %v460
    %v488 = vpack.c.b16 %v464, %v461
    %513 = vmatprep.subr.bf16.mxu0 %v466
    %514 = vmatpush1.bf16.msra.mxu0 %v465
    %515 = vmatprep.subr.bf16.mxu0 %v469
    %516 = vmatpush1.bf16.msra.mxu0 %v468
    %517 = vmatprep.subr.bf16.mxu0 %v472
    %518 = vmatpush1.bf16.msra.mxu0 %v471
    %519 = vmatprep.subr.bf16.mxu0 %v475
    %520 = vmatpush1.bf16.msra.mxu0 %v474
    %521 = vmatprep.subr.bf16.mxu0 %v478
    %522 = vmatpush1.bf16.msra.mxu0 %v477
    %523 = vmatprep.subr.bf16.mxu0 %v481
    %524 = vmatpush1.bf16.msra.mxu0 %v480
    %525 = vmatprep.subr.bf16.mxu0 %v484
    %526 = vmatpush1.bf16.msra.mxu0 %v483
    %527 = vmatprep.subr.bf16.mxu0 %v487
    %528 = vmatpush1.bf16.msra.mxu0 %v486
    %529 = vmatprep.subr.bf16.mxu0 0
    %530 = vmatpush1.bf16.msra.mxu0 0
    %531 = vmatprep.subr.bf16.mxu0 0
    %532 = vmatpush1.bf16.msra.mxu0 0
    %533 = vmatprep.subr.bf16.mxu0 0
    %534 = vmatpush1.bf16.msra.mxu0 0
    %535 = vmatprep.subr.bf16.mxu0 0
    %536 = vmatpush1.bf16.msra.mxu0 0
    %537 = vmatprep.subr.bf16.mxu0 0
    %538 = vmatpush1.bf16.msra.mxu0 0
    %539 = vmatprep.subr.bf16.mxu0 0
    %540 = vmatpush1.bf16.msra.mxu0 0
    %541 = vmatprep.subr.bf16.mxu0 0
    %542 = vmatpush1.bf16.msra.mxu0 0
    %543 = vmatprep.subr.bf16.mxu0 0
    %544 = vmatpush1.bf16.msra.mxu0 0
    %545 = vmatprep.mubr.bf16.mxu0 0
    %546 = vmatmul.mubr.bf16.gmra.mrb[0].mxu0 %v214
    %v547 = vpop.f32.mrb[0].mxu0
    %v548 = vadd.f32 %v373, %v547
    %v549 = vpop.f32.mrb[0].mxu0
    %v550 = vadd.f32 %v377, %v549
    %v551 = vpop.f32.mrb[0].mxu0
    %v552 = vadd.f32 %v373, %v551
    %v553 = vpop.f32.mrb[0].mxu0
    %v554 = vadd.f32 %v377, %v553
    %555 = vdwg.mxu0
    %556 = vmatprep.subr.bf16.mxu0 0
    %557 = vmatpush1.bf16.msra.mxu0 %v467
    %558 = vmatprep.subr.bf16.mxu0 0
    %559 = vmatpush1.bf16.msra.mxu0 %v470
    %560 = vmatprep.subr.bf16.mxu0 0
    %561 = vmatpush1.bf16.msra.mxu0 %v473
    %562 = vmatprep.subr.bf16.mxu0 0
    %563 = vmatpush1.bf16.msra.mxu0 %v476
    %564 = vmatprep.subr.bf16.mxu0 0
    %565 = vmatpush1.bf16.msra.mxu0 %v479
    %566 = vmatprep.subr.bf16.mxu0 0
    %567 = vmatpush1.bf16.msra.mxu0 %v482
    %568 = vmatprep.subr.bf16.mxu0 0
    %569 = vmatpush1.bf16.msra.mxu0 %v485
    %570 = vmatprep.subr.bf16.mxu0 0
    %571 = vmatpush1.bf16.msra.mxu0 %v488
    %572 = vmatprep.subr.bf16.mxu0 0
    %573 = vmatpush1.bf16.msra.mxu0 0
    %574 = vmatprep.subr.bf16.mxu0 0
    %575 = vmatpush1.bf16.msra.mxu0 0
    %576 = vmatprep.subr.bf16.mxu0 0
    %577 = vmatpush1.bf16.msra.mxu0 0
    %578 = vmatprep.subr.bf16.mxu0 0
    %579 = vmatpush1.bf16.msra.mxu0 0
    %580 = vmatprep.subr.bf16.mxu0 0
    %581 = vmatpush1.bf16.msra.mxu0 0
    %582 = vmatprep.subr.bf16.mxu0 0
    %583 = vmatpush1.bf16.msra.mxu0 0
    %584 = vmatprep.subr.bf16.mxu0 0
    %585 = vmatpush1.bf16.msra.mxu0 0
    %586 = vmatprep.subr.bf16.mxu0 0
    %587 = vmatpush1.bf16.msra.mxu0 0
    %588 = vmatprep.mubr.bf16.mxu0 0
    %589 = vmatmul.mubr.bf16.gmra.mrb[0].mxu0 %v214
    %v590 = vpop.f32.mrb[0].mxu0
    %v591 = vadd.f32 %v381, %v590
    %v592 = vpop.f32.mrb[0].mxu0
    %v593 = vpop.f32.mrb[0].mxu0
    %v594 = vadd.f32 %v381, %v593
    %v595 = vpop.f32.mrb[0].mxu0
    %596 = vdwg.mxu0
    %v597 = vadd.f32 %v287, %v548
    %v598 = vadd.f32 %v291, %v552
    %v599 = vxor.u32 %v597, 2147483648
    %v600 = vxor.u32 %v598, 2147483648
    %v601 = vmul.f32 %v599, 1.442695
    %v602 = vpow.pop %v601
    %v603 = vmul.f32 %v600, 1.442695
    %v604 = vpow.pop %v603
    %v605 = vadd.f32 %v602, 1.0
    %v606 = vadd.f32 %v604, 1.0
    %v607 = vrcp.pop %v605
    %v608 = vmul.f32 1.0, %v607
    %v609 = vrcp.pop %v606
    %v610 = vmul.f32 1.0, %v609
    %v611 = vadd.f32 %v289, %v550
    %v612 = vadd.f32 %v293, %v554
    %v613 = vxor.u32 %v611, 2147483648
    %v614 = vxor.u32 %v612, 2147483648
    %v615 = vmul.f32 %v613, 1.442695
    %v616 = vpow.pop %v615
    %v617 = vmul.f32 %v614, 1.442695
    %v618 = vpow.pop %v617
    %v619 = vadd.f32 %v616, 1.0
    %v620 = vadd.f32 %v618, 1.0
    %v621 = vrcp.pop %v619
    %v622 = vmul.f32 1.0, %v621
    %v623 = vrcp.pop %v620
    %v624 = vmul.f32 1.0, %v623
    %v625 = vmul.f32 %v608, %v591
    %v626 = vmul.f32 %v610, %v594
    %v627 = vadd.f32 %v330, %v625
    %v628 = vadd.f32 %v333, %v626
    %v629 = vtanh.pop %v627
    %v630 = vtanh.pop %v628
    %v631 = vmul.f32 %v622, %v629
    %v632 = vmul.f32 %v624, %v630
    %v633 = vsub.f32 1.0, %v622
    %v634 = vsub.f32 1.0, %v624
    %v635 = vmul.f32 %v633, %v156
    %v636 = vmul.f32 %v634, %v159
    %v637 = vadd.f32 %v631, %v635
    %v638 = vadd.f32 %v632, %v636
    %639 = vst [vmem:[#allocation11] sm:$0xff] %v637
    %640 = vst [vmem:[#allocation11 + $0x8] sm:$0xff] %v638
    // Predicated region
    $region54: #{tpu_custom_call.1} parent=1 // pred_check
      _
    $region55: #{tpu_custom_call.1} parent=1 // pred_check_branch
      %642 = sbr.rel (0) target = $region57
    $region56: #{tpu_custom_call.1} parent=1 // pred_region
      %s644 = ssub.s32 256, 256
      %645 = vsyncadd [#allocation4], %s644
      %s646 = sshll.u32 [#allocation11], 4
      %s647 = int_to_ptr.vmem [resolvable:$true] %s646
      %652 = dma.vmem_to_hbm [thread:$0]  %s647, 256, %s8, [#allocation4], 128, 128, 8
    $region57: #{tpu_custom_call.1} parent=1 // pred_fallthru
      _
    // Predicated region
    $region58: #{tpu_custom_call.1} parent=1 // pred_check
      _
    $region59: #{tpu_custom_call.1} parent=1 // pred_check_branch
      %654 = sbr.rel (0) target = $region61
    $region60: #{tpu_custom_call.1} parent=1 // pred_region
      %655 = dma.done [#allocation4], 256
    $region61: #{tpu_custom_call.1} parent=1 // pred_fallthru
      _
    %656 = vsyncpa [#allocation3], 1
    %657 = vsyncpa [#allocation6], 1
    %658 = vsyncpa [#allocation9], 1
    %659 = vsyncpa [#allocation4], 1

</llo_original>
